<compile_context>
chip_gen: v7x
topology: tpu7x:2x2x1
jax: 0.10.0
libtpu: 0.0.40
codegen_flags: <defaults>
</compile_context>

<pallas_src>
import functools

import jax
import jax.numpy as jnp
from jax.experimental import pallas as pl
from jax.experimental.pallas import tpu as pltpu


def _self_attention_kernel(v_ref, k_ref, q_ref,
                           wv_ref, wk_ref, wq_ref, wo_ref, bo_ref,
                           o_ref, *, embed_size, heads):
    bt, l_v, e = v_ref.shape
    _, l_k, _ = k_ref.shape
    _, l_q, _ = q_ref.shape
    head_dim = embed_size // heads
    scale = 1.0 / (embed_size ** 0.5)

    # ---- Projections on flattened (Bt*L, E) row blocks (fills the MXU M dim).
    v_flat = v_ref[...].reshape(bt * l_v, e)
    k_flat = k_ref[...].reshape(bt * l_k, e)
    q_flat = q_ref[...].reshape(bt * l_q, e)

    vp = jnp.dot(v_flat, wv_ref[...], preferred_element_type=jnp.float32)
    kp = jnp.dot(k_flat, wk_ref[...], preferred_element_type=jnp.float32)
    qp = jnp.dot(q_flat, wq_ref[...], preferred_element_type=jnp.float32)
    qp = qp * scale          # fold 1/sqrt(embed_size) into Q once (not per head)

    vp3 = vp.reshape(bt, l_v, e)
    kp3 = kp.reshape(bt, l_k, e)
    qp3 = qp.reshape(bt, l_q, e)

    # sum over the value_len axis: sum_v values[n, v, h, d]  ->  (Bt, E)
    v_sum = jnp.sum(vp3, axis=1)

    # Per-head softmax row-sums (heads is small and static -> unrolled loop).
    pieces = []
    for h in range(heads):
        sl = slice(h * head_dim, (h + 1) * head_dim)
        qh = qp3[:, :, sl]                                  # (Bt, Lq, D)
        kh = kp3[:, :, sl]                                  # (Bt, Lk, D)
        # energy[b, q, k] = sum_d qh * kh  (no materialized transpose of K)
        energy = jnp.einsum('bqd,bkd->bqk', qh, kh,
                            preferred_element_type=jnp.float32)
        m = jnp.max(energy, axis=-1, keepdims=True)
        p = jnp.exp(energy - m)
        s = jnp.sum(p, axis=-1, keepdims=True)
        attn = p / s                                        # softmax over k
        attn_rowsum = jnp.sum(attn, axis=-1, keepdims=True)  # (Bt, Lq, 1), ~1
        # out[n, q, h, d] = rowsum[n, h, q] * v_sum[n, h, d]
        pieces.append(attn_rowsum * v_sum[:, None, sl])     # (Bt, Lq, D)

    concat = jnp.concatenate(pieces, axis=-1)               # (Bt, Lq, E)

    # fc_out: y = x @ Wo^T + bo   (Wo passed pre-transposed), batched rows.
    out = jnp.dot(concat.reshape(bt * l_q, e), wo_ref[...],
                  preferred_element_type=jnp.float32)
    out = out + bo_ref[...]                                 # (1, E) broadcast
    o_ref[...] = out.reshape(bt, l_q, e).astype(o_ref.dtype)


def _pick_batch_tile(n, l, e, bytes_per_elem=4,
                     target_rows=512, vmem_block_budget=4 * 1024 * 1024):
    """Largest divisor Bt of n whose (Bt*l, e) block stays within a modest VMEM
    budget, preferring at least `target_rows` rows per grid step."""
    max_rows = max(l, vmem_block_budget // max(1, e * bytes_per_elem))
    best = 1
    for bt in range(1, n + 1):
        if n % bt != 0:
            continue
        if bt * l <= max_rows:
            best = bt
        if best * l >= target_rows:
            break
    return best


def self_attention_pallas(values, keys, queries,
                          wv, wk, wq, wo, bo,
                          *, embed_size, heads, batch_tile=None):
    """values/keys/queries: (N, L, E); w*: PyTorch convention (E_out, E_in); bo: (E,)."""
    N, Lv, E = values.shape
    _, Lk, _ = keys.shape
    _, Lq, _ = queries.shape
    assert E == embed_size and embed_size % heads == 0

    bt = batch_tile if batch_tile is not None else _pick_batch_tile(
        N, max(Lv, Lk, Lq), E)
    if N % bt != 0:
        bt = 1
    grid = (N // bt,)

    # Pre-transpose weights so the kernel computes x @ W^T.
    wv_t, wk_t, wq_t, wo_t = wv.T, wk.T, wq.T, wo.T
    bo_2d = bo.reshape(1, E)

    kernel = functools.partial(_self_attention_kernel,
                               embed_size=embed_size, heads=heads)

    grid_spec = pltpu.PrefetchScalarGridSpec(
        num_scalar_prefetch=0,
        grid=grid,
        in_specs=[
            pl.BlockSpec((bt, Lv, E), lambda n: (n, 0, 0)),   # values tile
            pl.BlockSpec((bt, Lk, E), lambda n: (n, 0, 0)),   # keys tile
            pl.BlockSpec((bt, Lq, E), lambda n: (n, 0, 0)),   # queries tile
            # Constant index_maps: weights/bias fetched once, resident across
            # grid steps (no per-step re-DMA of the (E, E) blocks).
            pl.BlockSpec((E, E), lambda n: (0, 0)),           # Wv^T
            pl.BlockSpec((E, E), lambda n: (0, 0)),           # Wk^T
            pl.BlockSpec((E, E), lambda n: (0, 0)),           # Wq^T
            pl.BlockSpec((E, E), lambda n: (0, 0)),           # Wo^T
            pl.BlockSpec((1, E), lambda n: (0, 0)),           # bo
        ],
        out_specs=pl.BlockSpec((bt, Lq, E), lambda n: (n, 0, 0)),
    )

    return pl.pallas_call(
        kernel,
        grid_spec=grid_spec,
        out_shape=jax.ShapeDtypeStruct((N, Lq, E), queries.dtype),
        compiler_params=pltpu.CompilerParams(
            dimension_semantics=("parallel",),
            vmem_limit_bytes=48 * 1024 * 1024,   # fits v7x's 64 MiB/TC budget
        ),
    )(values, keys, queries, wv_t, wk_t, wq_t, wo_t, bo_2d)


def self_attention_ref(values, keys, queries, wv, wk, wq, wo, bo,
                       *, embed_size, heads):
    """Pure-JAX reference mirroring the PyTorch module literally
    (including its 'nhqk,nvhd->nqhd' einsum with no shared contraction index)."""
    hp = jax.lax.Precision.HIGHEST
    N, Lq, E = queries.shape
    D = embed_size // heads
    v = jnp.matmul(values, wv.T, precision=hp)
    k = jnp.matmul(keys, wk.T, precision=hp)
    q = jnp.matmul(queries, wq.T, precision=hp)
    v = v.reshape(N, values.shape[1], heads, D)
    k = k.reshape(N, keys.shape[1], heads, D)
    q = q.reshape(N, Lq, heads, D)
    energy = jnp.einsum('nqhd,nkhd->nhqk', q, k, precision=hp)
    attn = jax.nn.softmax(energy / (embed_size ** 0.5), axis=3)
    out = jnp.einsum('nhqk,nvhd->nqhd', attn, v,
                     precision=hp).reshape(N, Lq, heads * D)
    return jnp.matmul(out, wo.T, precision=hp) + bo


if __name__ == "__main__":
    # Small shapes consistent with the module.
    N, L, E, H = 2, 8, 32, 4

    key = jax.random.PRNGKey(0)
    k_v, k_k, k_q, k_wv, k_wk, k_wq, k_wo, k_bo = jax.random.split(key, 8)

    values = jax.random.normal(k_v, (N, L, E), dtype=jnp.float32)
    keys_x = jax.random.normal(k_k, (N, L, E), dtype=jnp.float32)
    queries = jax.random.normal(k_q, (N, L, E), dtype=jnp.float32)

    # Parameters (PyTorch nn.Linear convention: weight shape (out, in)).
    wv = jax.random.normal(k_wv, (E, E), dtype=jnp.float32) * 0.1
    wk = jax.random.normal(k_wk, (E, E), dtype=jnp.float32) * 0.1
    wq = jax.random.normal(k_wq, (E, E), dtype=jnp.float32) * 0.1
    wo = jax.random.normal(k_wo, (E, E), dtype=jnp.float32) * 0.1
    bo = jax.random.normal(k_bo, (E,), dtype=jnp.float32) * 0.1

    out = self_attention_pallas(values, keys_x, queries, wv, wk, wq, wo, bo,
                                embed_size=E, heads=H)
    out = jax.block_until_ready(out)

    ref = self_attention_ref(values, keys_x, queries, wv, wk, wq, wo, bo,
                             embed_size=E, heads=H)
    assert out.shape == (N, L, E)
    # Tolerance accommodates possible MXU matmul-precision differences between
    # the Pallas f32 path and the HIGHEST-precision XLA reference; any semantic
    # error (e.g. standard attention instead of the module's degenerate einsum)
    # produces O(1) differences and is still caught.
    assert jnp.allclose(out, ref, atol=2e-2, rtol=2e-2), "mismatch vs reference"

    print("KERNEL_OK")
</pallas_src>

<mosaic_0001>
module attributes {stable_mosaic.version = 11 : i64} {
  func.func @_self_attention_kernel(%arg0: i32, %arg1: memref<2x8x32xf32, #tpu.memory_space<vmem>>, %arg2: memref<2x8x32xf32, #tpu.memory_space<vmem>>, %arg3: memref<2x8x32xf32, #tpu.memory_space<vmem>>, %arg4: memref<32x32xf32, #tpu.memory_space<vmem>>, %arg5: memref<32x32xf32, #tpu.memory_space<vmem>>, %arg6: memref<32x32xf32, #tpu.memory_space<vmem>>, %arg7: memref<32x32xf32, #tpu.memory_space<vmem>>, %arg8: memref<1x32xf32, #tpu.memory_space<vmem>>, %arg9: memref<2x8x32xf32, #tpu.memory_space<vmem>>) attributes {dimension_semantics = [#tpu.dimension_semantics<parallel>], iteration_bounds = array<i64: 1>, scalar_prefetch = 0 : i64, scratch_operands = 0 : i64, tpu.core_type = #tpu.core_type<tc>, window_params = [{transform_indices = @transform_0, window_bounds = array<i64: 2, 8, 32>}, {transform_indices = @transform_1, window_bounds = array<i64: 2, 8, 32>}, {transform_indices = @transform_2, window_bounds = array<i64: 2, 8, 32>}, {pipeline_mode = #tpu.pipeline_mode<synchronous>, transform_indices = @transform_3, window_bounds = array<i64: 32, 32>}, {pipeline_mode = #tpu.pipeline_mode<synchronous>, transform_indices = @transform_4, window_bounds = array<i64: 32, 32>}, {pipeline_mode = #tpu.pipeline_mode<synchronous>, transform_indices = @transform_5, window_bounds = array<i64: 32, 32>}, {pipeline_mode = #tpu.pipeline_mode<synchronous>, transform_indices = @transform_6, window_bounds = array<i64: 32, 32>}, {pipeline_mode = #tpu.pipeline_mode<synchronous>, transform_indices = @transform_7, window_bounds = array<i64: 1, 32>}, {transform_indices = @transform_8, window_bounds = array<i64: 2, 8, 32>}]} {
    %c0 = arith.constant 0 : index
    %c0_0 = arith.constant 0 : index
    %c0_1 = arith.constant 0 : index
    %0 = vector.load %arg1[%c0, %c0_0, %c0_1] : memref<2x8x32xf32, #tpu.memory_space<vmem>>, vector<2x8x32xf32>
    %1 = vector.shape_cast %0 : vector<2x8x32xf32> to vector<16x32xf32>
    %c0_2 = arith.constant 0 : index
    %c0_3 = arith.constant 0 : index
    %c0_4 = arith.constant 0 : index
    %2 = vector.load %arg2[%c0_2, %c0_3, %c0_4] : memref<2x8x32xf32, #tpu.memory_space<vmem>>, vector<2x8x32xf32>
    %3 = vector.shape_cast %2 : vector<2x8x32xf32> to vector<16x32xf32>
    %c0_5 = arith.constant 0 : index
    %c0_6 = arith.constant 0 : index
    %c0_7 = arith.constant 0 : index
    %4 = vector.load %arg3[%c0_5, %c0_6, %c0_7] : memref<2x8x32xf32, #tpu.memory_space<vmem>>, vector<2x8x32xf32>
    %5 = vector.shape_cast %4 : vector<2x8x32xf32> to vector<16x32xf32>
    %c0_8 = arith.constant 0 : index
    %c0_9 = arith.constant 0 : index
    %6 = vector.load %arg4[%c0_8, %c0_9] : memref<32x32xf32, #tpu.memory_space<vmem>>, vector<32x32xf32>
    %cst = arith.constant dense<0.000000e+00> : vector<16x32xf32>
    %7 = tpu.matmul %1, %6, %cst {dimension_numbers = #tpu.dot_dimension_numbers<[1], [0], [0], [1], [0, 0, 1, 1], [], []>} : vector<16x32xf32>, vector<32x32xf32>, vector<16x32xf32> -> vector<16x32xf32>
    %c0_10 = arith.constant 0 : index
    %c0_11 = arith.constant 0 : index
    %8 = vector.load %arg5[%c0_10, %c0_11] : memref<32x32xf32, #tpu.memory_space<vmem>>, vector<32x32xf32>
    %cst_12 = arith.constant dense<0.000000e+00> : vector<16x32xf32>
    %9 = tpu.matmul %3, %8, %cst_12 {dimension_numbers = #tpu.dot_dimension_numbers<[1], [0], [0], [1], [0, 0, 1, 1], [], []>} : vector<16x32xf32>, vector<32x32xf32>, vector<16x32xf32> -> vector<16x32xf32>
    %c0_13 = arith.constant 0 : index
    %c0_14 = arith.constant 0 : index
    %10 = vector.load %arg6[%c0_13, %c0_14] : memref<32x32xf32, #tpu.memory_space<vmem>>, vector<32x32xf32>
    %cst_15 = arith.constant dense<0.000000e+00> : vector<16x32xf32>
    %11 = tpu.matmul %5, %10, %cst_15 {dimension_numbers = #tpu.dot_dimension_numbers<[1], [0], [0], [1], [0, 0, 1, 1], [], []>} : vector<16x32xf32>, vector<32x32xf32>, vector<16x32xf32> -> vector<16x32xf32>
    %cst_16 = arith.constant 0.176776692 : f32
    %12 = vector.broadcast %cst_16 : f32 to vector<16x32xf32>
    %13 = arith.mulf %11, %12 : vector<16x32xf32>
    %14 = vector.shape_cast %7 : vector<16x32xf32> to vector<2x8x32xf32>
    %15 = vector.shape_cast %9 : vector<16x32xf32> to vector<2x8x32xf32>
    %16 = vector.shape_cast %13 : vector<16x32xf32> to vector<2x8x32xf32>
    %cst_17 = arith.constant dense<0.000000e+00> : vector<2x32xf32>
    %17 = vector.multi_reduction <add>, %14, %cst_17 [1] : vector<2x8x32xf32> to vector<2x32xf32>
    %18 = vector.extract_strided_slice %16 {offsets = [0, 0, 0], sizes = [2, 8, 8], strides = [1, 1, 1]} : vector<2x8x32xf32> to vector<2x8x8xf32>
    %19 = vector.extract_strided_slice %15 {offsets = [0, 0, 0], sizes = [2, 8, 8], strides = [1, 1, 1]} : vector<2x8x32xf32> to vector<2x8x8xf32>
    "tpu.trace_start"() <{level = 10 : i32, message = "bqd,bkd->bqk"}> : () -> ()
    %cst_18 = arith.constant dense<0.000000e+00> : vector<2x8x8xf32>
    %20 = tpu.matmul %18, %19, %cst_18 {dimension_numbers = #tpu.dot_dimension_numbers<[2], [2], [1], [1], [0, 0, 0, 1, 1, 1], [0], [0]>} : vector<2x8x8xf32>, vector<2x8x8xf32>, vector<2x8x8xf32> -> vector<2x8x8xf32>
    "tpu.trace_stop"() : () -> ()
    %cst_19 = arith.constant dense<0xFF800000> : vector<2x8xf32>
    %21 = vector.multi_reduction <maximumf>, %20, %cst_19 [2] : vector<2x8x8xf32> to vector<2x8xf32>
    %22 = vector.shape_cast %21 : vector<2x8xf32> to vector<2x8x1xf32>
    %23 = vector.broadcast %22 : vector<2x8x1xf32> to vector<2x8x8xf32>
    %24 = arith.subf %20, %23 : vector<2x8x8xf32>
    %25 = math.exp %24 : vector<2x8x8xf32>
    %cst_20 = arith.constant dense<0.000000e+00> : vector<2x8xf32>
    %26 = vector.multi_reduction <add>, %25, %cst_20 [2] : vector<2x8x8xf32> to vector<2x8xf32>
    %27 = vector.shape_cast %26 : vector<2x8xf32> to vector<2x8x1xf32>
    %28 = vector.broadcast %27 : vector<2x8x1xf32> to vector<2x8x8xf32>
    %29 = arith.divf %25, %28 : vector<2x8x8xf32>
    %cst_21 = arith.constant dense<0.000000e+00> : vector<2x8xf32>
    %30 = vector.multi_reduction <add>, %29, %cst_21 [2] : vector<2x8x8xf32> to vector<2x8xf32>
    %31 = vector.shape_cast %30 : vector<2x8xf32> to vector<2x8x1xf32>
    %32 = vector.extract_strided_slice %17 {offsets = [0, 0], sizes = [2, 8], strides = [1, 1]} : vector<2x32xf32> to vector<2x8xf32>
    %33 = vector.shape_cast %32 : vector<2x8xf32> to vector<2x1x8xf32>
    %34 = vector.broadcast %31 : vector<2x8x1xf32> to vector<2x8x8xf32>
    %35 = vector.broadcast %33 : vector<2x1x8xf32> to vector<2x8x8xf32>
    %36 = arith.mulf %34, %35 : vector<2x8x8xf32>
    %37 = vector.extract_strided_slice %16 {offsets = [0, 0, 8], sizes = [2, 8, 8], strides = [1, 1, 1]} : vector<2x8x32xf32> to vector<2x8x8xf32>
    %38 = vector.extract_strided_slice %15 {offsets = [0, 0, 8], sizes = [2, 8, 8], strides = [1, 1, 1]} : vector<2x8x32xf32> to vector<2x8x8xf32>
    "tpu.trace_start"() <{level = 10 : i32, message = "bqd,bkd->bqk"}> : () -> ()
    %cst_22 = arith.constant dense<0.000000e+00> : vector<2x8x8xf32>
    %39 = tpu.matmul %37, %38, %cst_22 {dimension_numbers = #tpu.dot_dimension_numbers<[2], [2], [1], [1], [0, 0, 0, 1, 1, 1], [0], [0]>} : vector<2x8x8xf32>, vector<2x8x8xf32>, vector<2x8x8xf32> -> vector<2x8x8xf32>
    "tpu.trace_stop"() : () -> ()
    %cst_23 = arith.constant dense<0xFF800000> : vector<2x8xf32>
    %40 = vector.multi_reduction <maximumf>, %39, %cst_23 [2] : vector<2x8x8xf32> to vector<2x8xf32>
    %41 = vector.shape_cast %40 : vector<2x8xf32> to vector<2x8x1xf32>
    %42 = vector.broadcast %41 : vector<2x8x1xf32> to vector<2x8x8xf32>
    %43 = arith.subf %39, %42 : vector<2x8x8xf32>
    %44 = math.exp %43 : vector<2x8x8xf32>
    %cst_24 = arith.constant dense<0.000000e+00> : vector<2x8xf32>
    %45 = vector.multi_reduction <add>, %44, %cst_24 [2] : vector<2x8x8xf32> to vector<2x8xf32>
    %46 = vector.shape_cast %45 : vector<2x8xf32> to vector<2x8x1xf32>
    %47 = vector.broadcast %46 : vector<2x8x1xf32> to vector<2x8x8xf32>
    %48 = arith.divf %44, %47 : vector<2x8x8xf32>
    %cst_25 = arith.constant dense<0.000000e+00> : vector<2x8xf32>
    %49 = vector.multi_reduction <add>, %48, %cst_25 [2] : vector<2x8x8xf32> to vector<2x8xf32>
    %50 = vector.shape_cast %49 : vector<2x8xf32> to vector<2x8x1xf32>
    %51 = vector.extract_strided_slice %17 {offsets = [0, 8], sizes = [2, 8], strides = [1, 1]} : vector<2x32xf32> to vector<2x8xf32>
    %52 = vector.shape_cast %51 : vector<2x8xf32> to vector<2x1x8xf32>
    %53 = vector.broadcast %50 : vector<2x8x1xf32> to vector<2x8x8xf32>
    %54 = vector.broadcast %52 : vector<2x1x8xf32> to vector<2x8x8xf32>
    %55 = arith.mulf %53, %54 : vector<2x8x8xf32>
    %56 = vector.extract_strided_slice %16 {offsets = [0, 0, 16], sizes = [2, 8, 8], strides = [1, 1, 1]} : vector<2x8x32xf32> to vector<2x8x8xf32>
    %57 = vector.extract_strided_slice %15 {offsets = [0, 0, 16], sizes = [2, 8, 8], strides = [1, 1, 1]} : vector<2x8x32xf32> to vector<2x8x8xf32>
    "tpu.trace_start"() <{level = 10 : i32, message = "bqd,bkd->bqk"}> : () -> ()
    %cst_26 = arith.constant dense<0.000000e+00> : vector<2x8x8xf32>
    %58 = tpu.matmul %56, %57, %cst_26 {dimension_numbers = #tpu.dot_dimension_numbers<[2], [2], [1], [1], [0, 0, 0, 1, 1, 1], [0], [0]>} : vector<2x8x8xf32>, vector<2x8x8xf32>, vector<2x8x8xf32> -> vector<2x8x8xf32>
    "tpu.trace_stop"() : () -> ()
    %cst_27 = arith.constant dense<0xFF800000> : vector<2x8xf32>
    %59 = vector.multi_reduction <maximumf>, %58, %cst_27 [2] : vector<2x8x8xf32> to vector<2x8xf32>
    %60 = vector.shape_cast %59 : vector<2x8xf32> to vector<2x8x1xf32>
    %61 = vector.broadcast %60 : vector<2x8x1xf32> to vector<2x8x8xf32>
    %62 = arith.subf %58, %61 : vector<2x8x8xf32>
    %63 = math.exp %62 : vector<2x8x8xf32>
    %cst_28 = arith.constant dense<0.000000e+00> : vector<2x8xf32>
    %64 = vector.multi_reduction <add>, %63, %cst_28 [2] : vector<2x8x8xf32> to vector<2x8xf32>
    %65 = vector.shape_cast %64 : vector<2x8xf32> to vector<2x8x1xf32>
    %66 = vector.broadcast %65 : vector<2x8x1xf32> to vector<2x8x8xf32>
    %67 = arith.divf %63, %66 : vector<2x8x8xf32>
    %cst_29 = arith.constant dense<0.000000e+00> : vector<2x8xf32>
    %68 = vector.multi_reduction <add>, %67, %cst_29 [2] : vector<2x8x8xf32> to vector<2x8xf32>
    %69 = vector.shape_cast %68 : vector<2x8xf32> to vector<2x8x1xf32>
    %70 = vector.extract_strided_slice %17 {offsets = [0, 16], sizes = [2, 8], strides = [1, 1]} : vector<2x32xf32> to vector<2x8xf32>
    %71 = vector.shape_cast %70 : vector<2x8xf32> to vector<2x1x8xf32>
    %72 = vector.broadcast %69 : vector<2x8x1xf32> to vector<2x8x8xf32>
    %73 = vector.broadcast %71 : vector<2x1x8xf32> to vector<2x8x8xf32>
    %74 = arith.mulf %72, %73 : vector<2x8x8xf32>
    %75 = vector.extract_strided_slice %16 {offsets = [0, 0, 24], sizes = [2, 8, 8], strides = [1, 1, 1]} : vector<2x8x32xf32> to vector<2x8x8xf32>
    %76 = vector.extract_strided_slice %15 {offsets = [0, 0, 24], sizes = [2, 8, 8], strides = [1, 1, 1]} : vector<2x8x32xf32> to vector<2x8x8xf32>
    "tpu.trace_start"() <{level = 10 : i32, message = "bqd,bkd->bqk"}> : () -> ()
    %cst_30 = arith.constant dense<0.000000e+00> : vector<2x8x8xf32>
    %77 = tpu.matmul %75, %76, %cst_30 {dimension_numbers = #tpu.dot_dimension_numbers<[2], [2], [1], [1], [0, 0, 0, 1, 1, 1], [0], [0]>} : vector<2x8x8xf32>, vector<2x8x8xf32>, vector<2x8x8xf32> -> vector<2x8x8xf32>
    "tpu.trace_stop"() : () -> ()
    %cst_31 = arith.constant dense<0xFF800000> : vector<2x8xf32>
    %78 = vector.multi_reduction <maximumf>, %77, %cst_31 [2] : vector<2x8x8xf32> to vector<2x8xf32>
    %79 = vector.shape_cast %78 : vector<2x8xf32> to vector<2x8x1xf32>
    %80 = vector.broadcast %79 : vector<2x8x1xf32> to vector<2x8x8xf32>
    %81 = arith.subf %77, %80 : vector<2x8x8xf32>
    %82 = math.exp %81 : vector<2x8x8xf32>
    %cst_32 = arith.constant dense<0.000000e+00> : vector<2x8xf32>
    %83 = vector.multi_reduction <add>, %82, %cst_32 [2] : vector<2x8x8xf32> to vector<2x8xf32>
    %84 = vector.shape_cast %83 : vector<2x8xf32> to vector<2x8x1xf32>
    %85 = vector.broadcast %84 : vector<2x8x1xf32> to vector<2x8x8xf32>
    %86 = arith.divf %82, %85 : vector<2x8x8xf32>
    %cst_33 = arith.constant dense<0.000000e+00> : vector<2x8xf32>
    %87 = vector.multi_reduction <add>, %86, %cst_33 [2] : vector<2x8x8xf32> to vector<2x8xf32>
    %88 = vector.shape_cast %87 : vector<2x8xf32> to vector<2x8x1xf32>
    %89 = vector.extract_strided_slice %17 {offsets = [0, 24], sizes = [2, 8], strides = [1, 1]} : vector<2x32xf32> to vector<2x8xf32>
    %90 = vector.shape_cast %89 : vector<2x8xf32> to vector<2x1x8xf32>
    %91 = vector.broadcast %88 : vector<2x8x1xf32> to vector<2x8x8xf32>
    %92 = vector.broadcast %90 : vector<2x1x8xf32> to vector<2x8x8xf32>
    %93 = arith.mulf %91, %92 : vector<2x8x8xf32>
    %94 = tpu.concatenate %36, %55, %74, %93 in 2 : vector<2x8x8xf32>, vector<2x8x8xf32>, vector<2x8x8xf32>, vector<2x8x8xf32> -> vector<2x8x32xf32>
    %95 = vector.shape_cast %94 : vector<2x8x32xf32> to vector<16x32xf32>
    %c0_34 = arith.constant 0 : index
    %c0_35 = arith.constant 0 : index
    %96 = vector.load %arg7[%c0_34, %c0_35] : memref<32x32xf32, #tpu.memory_space<vmem>>, vector<32x32xf32>
    %cst_36 = arith.constant dense<0.000000e+00> : vector<16x32xf32>
    %97 = tpu.matmul %95, %96, %cst_36 {dimension_numbers = #tpu.dot_dimension_numbers<[1], [0], [0], [1], [0, 0, 1, 1], [], []>} : vector<16x32xf32>, vector<32x32xf32>, vector<16x32xf32> -> vector<16x32xf32>
    %c0_37 = arith.constant 0 : index
    %c0_38 = arith.constant 0 : index
    %98 = vector.load %arg8[%c0_37, %c0_38] : memref<1x32xf32, #tpu.memory_space<vmem>>, vector<1x32xf32>
    %99 = vector.broadcast %98 : vector<1x32xf32> to vector<16x32xf32>
    %100 = arith.addf %97, %99 : vector<16x32xf32>
    %101 = vector.shape_cast %100 : vector<16x32xf32> to vector<2x8x32xf32>
    %c0_39 = arith.constant 0 : index
    %c0_40 = arith.constant 0 : index
    %c0_41 = arith.constant 0 : index
    %102 = vector.load %arg9[%c0_39, %c0_40, %c0_41] : memref<2x8x32xf32, #tpu.memory_space<vmem>>, vector<2x8x32xf32>
    tpu.vector_store %arg9[%c0_39, %c0_40, %c0_41], %101 {strides = array<i32>} : memref<2x8x32xf32, #tpu.memory_space<vmem>>, vector<2x8x32xf32>,
    return
  }
  func.func @transform_0(%arg0: i32) -> (i32, i32, i32) {
    %c0_i32 = arith.constant 0 : i32
    %c0_i32_0 = arith.constant 0 : i32
    %c0_i32_1 = arith.constant 0 : i32
    return %arg0, %c0_i32, %c0_i32_0 : i32, i32, i32
  }
  func.func @transform_1(%arg0: i32) -> (i32, i32, i32) {
    %c0_i32 = arith.constant 0 : i32
    %c0_i32_0 = arith.constant 0 : i32
    %c0_i32_1 = arith.constant 0 : i32
    return %arg0, %c0_i32, %c0_i32_0 : i32, i32, i32
  }
  func.func @transform_2(%arg0: i32) -> (i32, i32, i32) {
    %c0_i32 = arith.constant 0 : i32
    %c0_i32_0 = arith.constant 0 : i32
    %c0_i32_1 = arith.constant 0 : i32
    return %arg0, %c0_i32, %c0_i32_0 : i32, i32, i32
  }
  func.func @transform_3(%arg0: i32) -> (i32, i32) {
    %c0_i32 = arith.constant 0 : i32
    %c0_i32_0 = arith.constant 0 : i32
    %c0_i32_1 = arith.constant 0 : i32
    return %c0_i32, %c0_i32_0 : i32, i32
  }
  func.func @transform_4(%arg0: i32) -> (i32, i32) {
    %c0_i32 = arith.constant 0 : i32
    %c0_i32_0 = arith.constant 0 : i32
    %c0_i32_1 = arith.constant 0 : i32
    return %c0_i32, %c0_i32_0 : i32, i32
  }
  func.func @transform_5(%arg0: i32) -> (i32, i32) {
    %c0_i32 = arith.constant 0 : i32
    %c0_i32_0 = arith.constant 0 : i32
    %c0_i32_1 = arith.constant 0 : i32
    return %c0_i32, %c0_i32_0 : i32, i32
  }
  func.func @transform_6(%arg0: i32) -> (i32, i32) {
    %c0_i32 = arith.constant 0 : i32
    %c0_i32_0 = arith.constant 0 : i32
    %c0_i32_1 = arith.constant 0 : i32
    return %c0_i32, %c0_i32_0 : i32, i32
  }
  func.func @transform_7(%arg0: i32) -> (i32, i32) {
    %c0_i32 = arith.constant 0 : i32
    %c0_i32_0 = arith.constant 0 : i32
    %c0_i32_1 = arith.constant 0 : i32
    return %c0_i32, %c0_i32_0 : i32, i32
  }
  func.func @transform_8(%arg0: i32) -> (i32, i32, i32) {
    %c0_i32 = arith.constant 0 : i32
    %c0_i32_0 = arith.constant 0 : i32
    %c0_i32_1 = arith.constant 0 : i32
    return %arg0, %c0_i32, %c0_i32_0 : i32, i32, i32
  }
}

</mosaic_0001>

<llo_original>
// kernel: tpu_custom_call.1
$region0: #{tpu_custom_call.1}
  #allocation0 [shape = 'u32[]', space=smem, size = 0x4, offset = 0x4, fixed_abs, tag = 'smem constant byte address 0x4 - core index']
  #allocation1 [shape = 'u32[144,128]{1,0:T(1,128)}', space=vmem, size = 0x12000, scoped, tag = 'internal scratch']
  %s0 = inlined_call_operand.hbm [shape: f32[2,8,32], index: 0, kind: input, shape index: {}]
  %s1 = inlined_call_operand.hbm [shape: f32[2,8,32], index: 1, kind: input, shape index: {}]
  %s2 = inlined_call_operand.hbm [shape: f32[2,8,32], index: 2, kind: input, shape index: {}]
  %s3 = inlined_call_operand.hbm [shape: f32[32,32], index: 3, kind: input, shape index: {}]
  %s4 = inlined_call_operand.hbm [shape: f32[32,32], index: 4, kind: input, shape index: {}]
  %s5 = inlined_call_operand.hbm [shape: f32[32,32], index: 5, kind: input, shape index: {}]
  %s6 = inlined_call_operand.hbm [shape: f32[32,32], index: 6, kind: input, shape index: {}]
  %s7 = inlined_call_operand.vmem [shape: f32[1,32], index: 7, kind: input, shape index: {}]
  %s8 = inlined_call_operand.hbm [shape: f32[2,8,32], index: 8, kind: output, shape index: {}]
  %s9 = sld [smem:[#allocation0]]
  $region70: #{tpu_custom_call.1} parent=0
    _
  %s11 = ssub.s32 1, %s9
  %s12 = scalar_select 0, %s11, %s9
  $region1: #{tpu_custom_call.1} parent=0
    #allocation2 [shape = 'u8[8192]{0}', space=vmem, size = 0x2000, scoped, tag = 'input window, operand 0, single buffered']
    #allocation3 [shape = 's32[1]{0}', space=sflag, size = 0x4, scoped, tag = 'scoped memory for tpu_custom_call.1']
    #allocation4 [shape = 's32[1]{0}', space=sflag, size = 0x4, scoped, tag = 'scoped memory for tpu_custom_call.1']
    #allocation5 [shape = 'u8[8192]{0}', space=vmem, size = 0x2000, scoped, tag = 'input window, operand 1, single buffered']
    #allocation6 [shape = 's32[1]{0}', space=sflag, size = 0x4, scoped, tag = 'scoped memory for tpu_custom_call.1']
    #allocation7 [shape = 'u8[8192]{0}', space=vmem, size = 0x2000, scoped, tag = 'input window, operand 2, single buffered']
    #allocation8 [shape = 'u8[16384]{0}', space=vmem, size = 0x4000, scoped, tag = 'input window, operand 3, single buffered']
    #allocation9 [shape = 's32[1]{0}', space=sflag, size = 0x4, scoped, tag = 'scoped memory for tpu_custom_call.1']
    #allocation10 [shape = 'u8[16384]{0}', space=vmem, size = 0x4000, scoped, tag = 'input window, operand 4, single buffered']
    #allocation11 [shape = 'u8[16384]{0}', space=vmem, size = 0x4000, scoped, tag = 'input window, operand 5, single buffered']
    #allocation12 [shape = 's32[1]{0}', space=sflag, size = 0x4, scoped, tag = 'scoped memory for tpu_custom_call.1']
    #allocation13 [shape = 'u8[16384]{0}', space=vmem, size = 0x4000, scoped, tag = 'input window, operand 6, single buffered']
    #allocation14 [shape = 'u8[8192]{0}', space=vmem, size = 0x2000, scoped, tag = 'output window, operand 0, single buffered']
    %13 = vsyncpa [#allocation3], 0
    %14 = vsyncpa [#allocation6], 0
    %15 = vsyncpa [#allocation9], 0
    %16 = vsyncpa [#allocation12], 0
    %17 = vsyncpa [#allocation4], 0
    // Predicated region
    $region2: #{tpu_custom_call.1} parent=1 // pred_check
      _
    $region3: #{tpu_custom_call.1} parent=1 // pred_check_branch
      %19 = sbr.rel (0) target = $region5
    $region4: #{tpu_custom_call.1} parent=1 // pred_region
      %s21 = ssub.s32 256, 256
      %22 = vsyncadd [#allocation3], %s21
      %s23 = sshll.u32 [#allocation2], 4
      %s24 = int_to_ptr.vmem [resolvable:$true] %s23
      %29 = dma.hbm_to_vmem [thread:$0]  %s0, 256, %s24, [#allocation3], 128, 128, 8
    $region5: #{tpu_custom_call.1} parent=1 // pred_fallthru
      _
    // Predicated region
    $region6: #{tpu_custom_call.1} parent=1 // pred_check
      _
    $region7: #{tpu_custom_call.1} parent=1 // pred_check_branch
      %31 = sbr.rel (0) target = $region9
    $region8: #{tpu_custom_call.1} parent=1 // pred_region
      %s33 = ssub.s32 256, 256
      %34 = vsyncadd [#allocation6], %s33
      %s35 = sshll.u32 [#allocation5], 4
      %s36 = int_to_ptr.vmem [resolvable:$true] %s35
      %41 = dma.hbm_to_vmem [thread:$0]  %s1, 256, %s36, [#allocation6], 128, 128, 8
    $region9: #{tpu_custom_call.1} parent=1 // pred_fallthru
      _
    // Predicated region
    $region10: #{tpu_custom_call.1} parent=1 // pred_check
      _
    $region11: #{tpu_custom_call.1} parent=1 // pred_check_branch
      %43 = sbr.rel (0) target = $region13
    $region12: #{tpu_custom_call.1} parent=1 // pred_region
      %s45 = ssub.s32 256, 256
      %46 = vsyncadd [#allocation6], %s45
      %s47 = sshll.u32 [#allocation7], 4
      %s48 = int_to_ptr.vmem [resolvable:$true] %s47
      %53 = dma.hbm_to_vmem [thread:$0]  %s2, 256, %s48, [#allocation6], 128, 128, 8
    $region13: #{tpu_custom_call.1} parent=1 // pred_fallthru
      _
    // Predicated region
    $region14: #{tpu_custom_call.1} parent=1 // pred_check
      _
    $region15: #{tpu_custom_call.1} parent=1 // pred_check_branch
      %55 = sbr.rel (0) target = $region17
    $region16: #{tpu_custom_call.1} parent=1 // pred_region
      %s57 = ssub.s32 512, 512
      %58 = vsyncadd [#allocation9], %s57
      %s59 = sshll.u32 [#allocation8], 4
      %s60 = int_to_ptr.vmem [resolvable:$true] %s59
      %65 = dma.hbm_to_vmem [thread:$0]  %s3, 512, %s60, [#allocation9], 128, 128, 8
    $region17: #{tpu_custom_call.1} parent=1 // pred_fallthru
      _
    // Predicated region
    $region18: #{tpu_custom_call.1} parent=1 // pred_check
      _
    $region19: #{tpu_custom_call.1} parent=1 // pred_check_branch
      %67 = sbr.rel (0) target = $region21
    $region20: #{tpu_custom_call.1} parent=1 // pred_region
      %s69 = ssub.s32 512, 512
      %70 = vsyncadd [#allocation9], %s69
      %s71 = sshll.u32 [#allocation10], 4
      %s72 = int_to_ptr.vmem [resolvable:$true] %s71
      %77 = dma.hbm_to_vmem [thread:$0]  %s4, 512, %s72, [#allocation9], 128, 128, 8
    $region21: #{tpu_custom_call.1} parent=1 // pred_fallthru
      _
    // Predicated region
    $region22: #{tpu_custom_call.1} parent=1 // pred_check
      _
    $region23: #{tpu_custom_call.1} parent=1 // pred_check_branch
      %79 = sbr.rel (0) target = $region25
    $region24: #{tpu_custom_call.1} parent=1 // pred_region
      %s81 = ssub.s32 512, 512
      %82 = vsyncadd [#allocation12], %s81
      %s83 = sshll.u32 [#allocation11], 4
      %s84 = int_to_ptr.vmem [resolvable:$true] %s83
      %89 = dma.hbm_to_vmem [thread:$0]  %s5, 512, %s84, [#allocation12], 128, 128, 8
    $region25: #{tpu_custom_call.1} parent=1 // pred_fallthru
      _
    // Predicated region
    $region26: #{tpu_custom_call.1} parent=1 // pred_check
      _
    $region27: #{tpu_custom_call.1} parent=1 // pred_check_branch
      %91 = sbr.rel (0) target = $region29
    $region28: #{tpu_custom_call.1} parent=1 // pred_region
      %s93 = ssub.s32 512, 512
      %94 = vsyncadd [#allocation12], %s93
      %s95 = sshll.u32 [#allocation13], 4
      %s96 = int_to_ptr.vmem [resolvable:$true] %s95
      %101 = dma.hbm_to_vmem [thread:$0]  %s6, 512, %s96, [#allocation12], 128, 128, 8
    $region29: #{tpu_custom_call.1} parent=1 // pred_fallthru
      _
    // Predicated region
    $region30: #{tpu_custom_call.1} parent=1 // pred_check
      _
    $region31: #{tpu_custom_call.1} parent=1 // pred_check_branch
      %103 = sbr.rel (0) target = $region33
    $region32: #{tpu_custom_call.1} parent=1 // pred_region
      _
    $region33: #{tpu_custom_call.1} parent=1 // pred_fallthru
      _
    // Predicated region
    $region34: #{tpu_custom_call.1} parent=1 // pred_check
      _
    $region35: #{tpu_custom_call.1} parent=1 // pred_check_branch
      %105 = sbr.rel (0) target = $region37
    $region36: #{tpu_custom_call.1} parent=1 // pred_region
      %106 = dma.done [#allocation3], 256
    $region37: #{tpu_custom_call.1} parent=1 // pred_fallthru
      _
    // Predicated region
    $region38: #{tpu_custom_call.1} parent=1 // pred_check
      _
    $region39: #{tpu_custom_call.1} parent=1 // pred_check_branch
      %108 = sbr.rel (0) target = $region41
    $region40: #{tpu_custom_call.1} parent=1 // pred_region
      %109 = dma.done [#allocation6], 256
    $region41: #{tpu_custom_call.1} parent=1 // pred_fallthru
      _
    // Predicated region
    $region42: #{tpu_custom_call.1} parent=1 // pred_check
      _
    $region43: #{tpu_custom_call.1} parent=1 // pred_check_branch
      %111 = sbr.rel (0) target = $region45
    $region44: #{tpu_custom_call.1} parent=1 // pred_region
      %112 = dma.done [#allocation6], 256
    $region45: #{tpu_custom_call.1} parent=1 // pred_fallthru
      _
    // Predicated region
    $region46: #{tpu_custom_call.1} parent=1 // pred_check
      _
    $region47: #{tpu_custom_call.1} parent=1 // pred_check_branch
      %114 = sbr.rel (0) target = $region49
    $region48: #{tpu_custom_call.1} parent=1 // pred_region
      %115 = dma.done [#allocation9], 512
    $region49: #{tpu_custom_call.1} parent=1 // pred_fallthru
      _
    // Predicated region
    $region50: #{tpu_custom_call.1} parent=1 // pred_check
      _
    $region51: #{tpu_custom_call.1} parent=1 // pred_check_branch
      %117 = sbr.rel (0) target = $region53
    $region52: #{tpu_custom_call.1} parent=1 // pred_region
      %118 = dma.done [#allocation9], 512
    $region53: #{tpu_custom_call.1} parent=1 // pred_fallthru
      _
    // Predicated region
    $region54: #{tpu_custom_call.1} parent=1 // pred_check
      _
    $region55: #{tpu_custom_call.1} parent=1 // pred_check_branch
      %120 = sbr.rel (0) target = $region57
    $region56: #{tpu_custom_call.1} parent=1 // pred_region
      %121 = dma.done [#allocation12], 512
    $region57: #{tpu_custom_call.1} parent=1 // pred_fallthru
      _
    // Predicated region
    $region58: #{tpu_custom_call.1} parent=1 // pred_check
      _
    $region59: #{tpu_custom_call.1} parent=1 // pred_check_branch
      %123 = sbr.rel (0) target = $region61
    $region60: #{tpu_custom_call.1} parent=1 // pred_region
      %124 = dma.done [#allocation12], 512
    $region61: #{tpu_custom_call.1} parent=1 // pred_fallthru
      _
    %v125 = vld [vmem:[#allocation2] sm:$0xff]
    %v126 = vld [vmem:[#allocation2 + $0x8] sm:$0xff]
    %v127 = vld [vmem:[#allocation5] sm:$0xff]
    %v128 = vld [vmem:[#allocation5 + $0x8] sm:$0xff]
    %v129 = vld [vmem:[#allocation7] sm:$0xff]
    %v130 = vld [vmem:[#allocation7 + $0x8] sm:$0xff]
    %v131 = vld [vmem:[#allocation8] sm:$0xff]
    %v132 = vld [vmem:[#allocation8 + $0x8] sm:$0xff]
    %v133 = vld [vmem:[#allocation8 + $0x10] sm:$0xff]
    %v134 = vld [vmem:[#allocation8 + $0x18] sm:$0xff]
    %vm135 = vcmask 261120
    %v137 = vsel %vm135, %v125, 0
    %v140 = vsel %vm135, %v126, 0
    %142 = vmatprep.subr.mxu0 0.0
    %143 = vmatpush1.msra.mxu0 %v131
    %144 = vmatprep.subr.mxu0 0.0
    %145 = vmatpush1.msra.mxu0 %v132
    %146 = vmatprep.subr.mxu0 0.0
    %147 = vmatpush1.msra.mxu0 %v133
    %148 = vmatprep.subr.mxu0 0.0
    %149 = vmatpush1.msra.mxu0 %v134
    %150 = vmatprep.subr.mxu0 0.0
    %151 = vmatpush1.msra.mxu0 0.0
    %152 = vmatprep.subr.mxu0 0.0
    %153 = vmatpush1.msra.mxu0 0.0
    %154 = vmatprep.subr.mxu0 0.0
    %155 = vmatpush1.msra.mxu0 0.0
    %156 = vmatprep.subr.mxu0 0.0
    %157 = vmatpush1.msra.mxu0 0.0
    %158 = vmatprep.subr.mxu0 0.0
    %159 = vmatpush1.msra.mxu0 0.0
    %160 = vmatprep.subr.mxu0 0.0
    %161 = vmatpush1.msra.mxu0 0.0
    %162 = vmatprep.subr.mxu0 0.0
    %163 = vmatpush1.msra.mxu0 0.0
    %164 = vmatprep.subr.mxu0 0.0
    %165 = vmatpush1.msra.mxu0 0.0
    %166 = vmatprep.subr.mxu0 0.0
    %167 = vmatpush1.msra.mxu0 0.0
    %168 = vmatprep.subr.mxu0 0.0
    %169 = vmatpush1.msra.mxu0 0.0
    %170 = vmatprep.subr.mxu0 0.0
    %171 = vmatpush1.msra.mxu0 0.0
    %172 = vmatprep.subr.mxu0 0.0
    %173 = vmatpush1.msra.mxu0 0.0
    %174 = vmatprep.subr.mxu0 0.0
    %175 = vmatpush1.msra.mxu0 0.0
    %176 = vmatprep.subr.mxu0 0.0
    %177 = vmatpush1.msra.mxu0 0.0
    %178 = vmatprep.subr.mxu0 0.0
    %179 = vmatpush1.msra.mxu0 0.0
    %180 = vmatprep.subr.mxu0 0.0
    %181 = vmatpush1.msra.mxu0 0.0
    %182 = vmatprep.subr.mxu0 0.0
    %183 = vmatpush1.msra.mxu0 0.0
    %184 = vmatprep.subr.mxu0 0.0
    %185 = vmatpush1.msra.mxu0 0.0
    %186 = vmatprep.subr.mxu0 0.0
    %187 = vmatpush1.msra.mxu0 0.0
    %188 = vmatprep.subr.mxu0 0.0
    %189 = vmatpush1.msra.mxu0 0.0
    %190 = vmatprep.subr.mxu0 0.0
    %191 = vmatpush1.msra.mxu0 0.0
    %192 = vmatprep.subr.mxu0 0.0
    %193 = vmatpush1.msra.mxu0 0.0
    %194 = vmatprep.subr.mxu0 0.0
    %195 = vmatpush1.msra.mxu0 0.0
    %196 = vmatprep.subr.mxu0 0.0
    %197 = vmatpush1.msra.mxu0 0.0
    %198 = vmatprep.subr.mxu0 0.0
    %199 = vmatpush1.msra.mxu0 0.0
    %200 = vmatprep.subr.mxu0 0.0
    %201 = vmatpush1.msra.mxu0 0.0
    %202 = vmatprep.subr.mxu0 0.0
    %203 = vmatpush1.msra.mxu0 0.0
    %204 = vmatprep.subr.mxu0 0.0
    %205 = vmatpush1.msra.mxu0 0.0
    %206 = vmatprep.mubr.f32.mxu0 0.0
    %207 = vmatmul.mubr.f32.gmra.mrb[0].mxu0 %v137
    %v208 = vpop.f32.mrb[0].mxu0
    %v209 = vadd.f32 0.0, %v208
    %v210 = vpop.f32.mrb[0].mxu0
    %211 = vmatprep.mubr.f32.mxu0 0.0
    %212 = vmatmul.mubr.f32.gmra.mrb[0].mxu0 %v140
    %v213 = vpop.f32.mrb[0].mxu0
    %v214 = vadd.f32 0.0, %v213
    %v215 = vpop.f32.mrb[0].mxu0
    %216 = vdwg.mxu0
    %v217 = vld [vmem:[#allocation10] sm:$0xff]
    %v218 = vld [vmem:[#allocation10 + $0x8] sm:$0xff]
    %v219 = vld [vmem:[#allocation10 + $0x10] sm:$0xff]
    %v220 = vld [vmem:[#allocation10 + $0x18] sm:$0xff]
    %v222 = vsel %vm135, %v127, 0
    %v225 = vsel %vm135, %v128, 0
    %227 = vmatprep.subr.mxu0 0.0
    %228 = vmatpush1.msra.mxu0 %v217
    %229 = vmatprep.subr.mxu0 0.0
    %230 = vmatpush1.msra.mxu0 %v218
    %231 = vmatprep.subr.mxu0 0.0
    %232 = vmatpush1.msra.mxu0 %v219
    %233 = vmatprep.subr.mxu0 0.0
    %234 = vmatpush1.msra.mxu0 %v220
    %235 = vmatprep.subr.mxu0 0.0
    %236 = vmatpush1.msra.mxu0 0.0
    %237 = vmatprep.subr.mxu0 0.0
    %238 = vmatpush1.msra.mxu0 0.0
    %239 = vmatprep.subr.mxu0 0.0
    %240 = vmatpush1.msra.mxu0 0.0
    %241 = vmatprep.subr.mxu0 0.0
    %242 = vmatpush1.msra.mxu0 0.0
    %243 = vmatprep.subr.mxu0 0.0
    %244 = vmatpush1.msra.mxu0 0.0
    %245 = vmatprep.subr.mxu0 0.0
    %246 = vmatpush1.msra.mxu0 0.0
    %247 = vmatprep.subr.mxu0 0.0
    %248 = vmatpush1.msra.mxu0 0.0
    %249 = vmatprep.subr.mxu0 0.0
    %250 = vmatpush1.msra.mxu0 0.0
    %251 = vmatprep.subr.mxu0 0.0
    %252 = vmatpush1.msra.mxu0 0.0
    %253 = vmatprep.subr.mxu0 0.0
    %254 = vmatpush1.msra.mxu0 0.0
    %255 = vmatprep.subr.mxu0 0.0
    %256 = vmatpush1.msra.mxu0 0.0
    %257 = vmatprep.subr.mxu0 0.0
    %258 = vmatpush1.msra.mxu0 0.0
    %259 = vmatprep.subr.mxu0 0.0
    %260 = vmatpush1.msra.mxu0 0.0
    %261 = vmatprep.subr.mxu0 0.0
    %262 = vmatpush1.msra.mxu0 0.0
    %263 = vmatprep.subr.mxu0 0.0
    %264 = vmatpush1.msra.mxu0 0.0
    %265 = vmatprep.subr.mxu0 0.0
    %266 = vmatpush1.msra.mxu0 0.0
    %267 = vmatprep.subr.mxu0 0.0
    %268 = vmatpush1.msra.mxu0 0.0
    %269 = vmatprep.subr.mxu0 0.0
    %270 = vmatpush1.msra.mxu0 0.0
    %271 = vmatprep.subr.mxu0 0.0
    %272 = vmatpush1.msra.mxu0 0.0
    %273 = vmatprep.subr.mxu0 0.0
    %274 = vmatpush1.msra.mxu0 0.0
    %275 = vmatprep.subr.mxu0 0.0
    %276 = vmatpush1.msra.mxu0 0.0
    %277 = vmatprep.subr.mxu0 0.0
    %278 = vmatpush1.msra.mxu0 0.0
    %279 = vmatprep.subr.mxu0 0.0
    %280 = vmatpush1.msra.mxu0 0.0
    %281 = vmatprep.subr.mxu0 0.0
    %282 = vmatpush1.msra.mxu0 0.0
    %283 = vmatprep.subr.mxu0 0.0
    %284 = vmatpush1.msra.mxu0 0.0
    %285 = vmatprep.subr.mxu0 0.0
    %286 = vmatpush1.msra.mxu0 0.0
    %287 = vmatprep.subr.mxu0 0.0
    %288 = vmatpush1.msra.mxu0 0.0
    %289 = vmatprep.subr.mxu0 0.0
    %290 = vmatpush1.msra.mxu0 0.0
    %291 = vmatprep.mubr.f32.mxu0 0.0
    %292 = vmatmul.mubr.f32.gmra.mrb[0].mxu0 %v222
    %v293 = vpop.f32.mrb[0].mxu0
    %v294 = vadd.f32 0.0, %v293
    %v295 = vpop.f32.mrb[0].mxu0
    %296 = vmatprep.mubr.f32.mxu0 0.0
    %297 = vmatmul.mubr.f32.gmra.mrb[0].mxu0 %v225
    %v298 = vpop.f32.mrb[0].mxu0
    %v299 = vadd.f32 0.0, %v298
    %v300 = vpop.f32.mrb[0].mxu0
    %301 = vdwg.mxu0
    %v302 = vld [vmem:[#allocation11] sm:$0xff]
    %v303 = vld [vmem:[#allocation11 + $0x8] sm:$0xff]
    %v304 = vld [vmem:[#allocation11 + $0x10] sm:$0xff]
    %v305 = vld [vmem:[#allocation11 + $0x18] sm:$0xff]
    %v307 = vsel %vm135, %v129, 0
    %v310 = vsel %vm135, %v130, 0
    %312 = vmatprep.subr.mxu0 0.0
    %313 = vmatpush1.msra.mxu0 %v302
    %314 = vmatprep.subr.mxu0 0.0
    %315 = vmatpush1.msra.mxu0 %v303
    %316 = vmatprep.subr.mxu0 0.0
    %317 = vmatpush1.msra.mxu0 %v304
    %318 = vmatprep.subr.mxu0 0.0
    %319 = vmatpush1.msra.mxu0 %v305
    %320 = vmatprep.subr.mxu0 0.0
    %321 = vmatpush1.msra.mxu0 0.0
    %322 = vmatprep.subr.mxu0 0.0
    %323 = vmatpush1.msra.mxu0 0.0
    %324 = vmatprep.subr.mxu0 0.0
    %325 = vmatpush1.msra.mxu0 0.0
    %326 = vmatprep.subr.mxu0 0.0
    %327 = vmatpush1.msra.mxu0 0.0
    %328 = vmatprep.subr.mxu0 0.0
    %329 = vmatpush1.msra.mxu0 0.0
    %330 = vmatprep.subr.mxu0 0.0
    %331 = vmatpush1.msra.mxu0 0.0
    %332 = vmatprep.subr.mxu0 0.0
    %333 = vmatpush1.msra.mxu0 0.0
    %334 = vmatprep.subr.mxu0 0.0
    %335 = vmatpush1.msra.mxu0 0.0
    %336 = vmatprep.subr.mxu0 0.0
    %337 = vmatpush1.msra.mxu0 0.0
    %338 = vmatprep.subr.mxu0 0.0
    %339 = vmatpush1.msra.mxu0 0.0
    %340 = vmatprep.subr.mxu0 0.0
    %341 = vmatpush1.msra.mxu0 0.0
    %342 = vmatprep.subr.mxu0 0.0
    %343 = vmatpush1.msra.mxu0 0.0
    %344 = vmatprep.subr.mxu0 0.0
    %345 = vmatpush1.msra.mxu0 0.0
    %346 = vmatprep.subr.mxu0 0.0
    %347 = vmatpush1.msra.mxu0 0.0
    %348 = vmatprep.subr.mxu0 0.0
    %349 = vmatpush1.msra.mxu0 0.0
    %350 = vmatprep.subr.mxu0 0.0
    %351 = vmatpush1.msra.mxu0 0.0
    %352 = vmatprep.subr.mxu0 0.0
    %353 = vmatpush1.msra.mxu0 0.0
    %354 = vmatprep.subr.mxu0 0.0
    %355 = vmatpush1.msra.mxu0 0.0
    %356 = vmatprep.subr.mxu0 0.0
    %357 = vmatpush1.msra.mxu0 0.0
    %358 = vmatprep.subr.mxu0 0.0
    %359 = vmatpush1.msra.mxu0 0.0
    %360 = vmatprep.subr.mxu0 0.0
    %361 = vmatpush1.msra.mxu0 0.0
    %362 = vmatprep.subr.mxu0 0.0
    %363 = vmatpush1.msra.mxu0 0.0
    %364 = vmatprep.subr.mxu0 0.0
    %365 = vmatpush1.msra.mxu0 0.0
    %366 = vmatprep.subr.mxu0 0.0
    %367 = vmatpush1.msra.mxu0 0.0
    %368 = vmatprep.subr.mxu0 0.0
    %369 = vmatpush1.msra.mxu0 0.0
    %370 = vmatprep.subr.mxu0 0.0
    %371 = vmatpush1.msra.mxu0 0.0
    %372 = vmatprep.subr.mxu0 0.0
    %373 = vmatpush1.msra.mxu0 0.0
    %374 = vmatprep.subr.mxu0 0.0
    %375 = vmatpush1.msra.mxu0 0.0
    %376 = vmatprep.mubr.f32.mxu0 0.0
    %377 = vmatmul.mubr.f32.gmra.mrb[0].mxu0 %v307
    %v378 = vpop.f32.mrb[0].mxu0
    %v379 = vadd.f32 0.0, %v378
    %v380 = vpop.f32.mrb[0].mxu0
    %381 = vmatprep.mubr.f32.mxu0 0.0
    %382 = vmatmul.mubr.f32.gmra.mrb[0].mxu0 %v310
    %v383 = vpop.f32.mrb[0].mxu0
    %v384 = vadd.f32 0.0, %v383
    %v385 = vpop.f32.mrb[0].mxu0
    %386 = vdwg.mxu0
    %v387 = vmul.f32 %v379, 0.17677669
    %v388 = vmul.f32 %v384, 0.17677669
    %v389 = vsel %vm135, %v209, 0.0
    %v390 = vrot.slane %v389, 4
    %v391 = vadd.f32 %v389, %v390
    %v392 = vrot.slane %v391, 2
    %v393 = vadd.f32 %v391, %v392
    %v394 = vrot.slane %v393, 1
    %v395 = vadd.f32 %v393, %v394
    %v396 = vsel %vm135, %v214, 0.0
    %v397 = vrot.slane %v396, 4
    %v398 = vadd.f32 %v396, %v397
    %v399 = vrot.slane %v398, 2
    %v400 = vadd.f32 %v398, %v399
    %v401 = vrot.slane %v400, 1
    %v402 = vadd.f32 %v400, %v401
    %vm403 = vcmask 64512
    %v405 = vsel %vm403, %v387, 0
    %v408 = vsel %vm403, %v294, 0
    %410 = vmatprep.subr.mxu0 0.0
    %411 = vmatpush1.xpose.msra.mxu0 %v408
    %412 = vmatprep.subr.mxu0 0.0
    %413 = vmatpush1.xpose.msra.mxu0 0.0
    %414 = vmatprep.subr.mxu0 0.0
    %415 = vmatpush1.xpose.msra.mxu0 0.0
    %416 = vmatprep.subr.mxu0 0.0
    %417 = vmatpush1.xpose.msra.mxu0 0.0
    %418 = vmatprep.subr.mxu0 0.0
    %419 = vmatpush1.xpose.msra.mxu0 0.0
    %420 = vmatprep.subr.mxu0 0.0
    %421 = vmatpush1.xpose.msra.mxu0 0.0
    %422 = vmatprep.subr.mxu0 0.0
    %423 = vmatpush1.xpose.msra.mxu0 0.0
    %424 = vmatprep.subr.mxu0 0.0
    %425 = vmatpush1.xpose.msra.mxu0 0.0
    %426 = vmatprep.subr.mxu0 0.0
    %427 = vmatpush1.xpose.msra.mxu0 0.0
    %428 = vmatprep.subr.mxu0 0.0
    %429 = vmatpush1.xpose.msra.mxu0 0.0
    %430 = vmatprep.subr.mxu0 0.0
    %431 = vmatpush1.xpose.msra.mxu0 0.0
    %432 = vmatprep.subr.mxu0 0.0
    %433 = vmatpush1.xpose.msra.mxu0 0.0
    %434 = vmatprep.subr.mxu0 0.0
    %435 = vmatpush1.xpose.msra.mxu0 0.0
    %436 = vmatprep.subr.mxu0 0.0
    %437 = vmatpush1.xpose.msra.mxu0 0.0
    %438 = vmatprep.subr.mxu0 0.0
    %439 = vmatpush1.xpose.msra.mxu0 0.0
    %440 = vmatprep.subr.mxu0 0.0
    %441 = vmatpush1.xpose.msra.mxu0 0.0
    %442 = vmatprep.subr.mxu0 0.0
    %443 = vmatpush1.xpose.msra.mxu0 0.0
    %444 = vmatprep.subr.mxu0 0.0
    %445 = vmatpush1.xpose.msra.mxu0 0.0
    %446 = vmatprep.subr.mxu0 0.0
    %447 = vmatpush1.xpose.msra.mxu0 0.0
    %448 = vmatprep.subr.mxu0 0.0
    %449 = vmatpush1.xpose.msra.mxu0 0.0
    %450 = vmatprep.subr.mxu0 0.0
    %451 = vmatpush1.xpose.msra.mxu0 0.0
    %452 = vmatprep.subr.mxu0 0.0
    %453 = vmatpush1.xpose.msra.mxu0 0.0
    %454 = vmatprep.subr.mxu0 0.0
    %455 = vmatpush1.xpose.msra.mxu0 0.0
    %456 = vmatprep.subr.mxu0 0.0
    %457 = vmatpush1.xpose.msra.mxu0 0.0
    %458 = vmatprep.subr.mxu0 0.0
    %459 = vmatpush1.xpose.msra.mxu0 0.0
    %460 = vmatprep.subr.mxu0 0.0
    %461 = vmatpush1.xpose.msra.mxu0 0.0
    %462 = vmatprep.subr.mxu0 0.0
    %463 = vmatpush1.xpose.msra.mxu0 0.0
    %464 = vmatprep.subr.mxu0 0.0
    %465 = vmatpush1.xpose.msra.mxu0 0.0
    %466 = vmatprep.subr.mxu0 0.0
    %467 = vmatpush1.xpose.msra.mxu0 0.0
    %468 = vmatprep.subr.mxu0 0.0
    %469 = vmatpush1.xpose.msra.mxu0 0.0
    %470 = vmatprep.subr.mxu0 0.0
    %471 = vmatpush1.xpose.msra.mxu0 0.0
    %472 = vmatprep.subr.mxu0 0.0
    %473 = vmatpush1.xpose.msra.mxu0 0.0
    %474 = vmatprep.mubr.f32.mxu0 0.0
    %475 = vmatmul.mubr.f32.gmra.mrb[0].mxu0 %v405
    %v476 = vpop.f32.mrb[0].mxu0
    %v477 = vadd.f32 0.0, %v476
    %v478 = vpop.f32.mrb[0].mxu0
    %479 = vdwg.mxu0
    %v481 = vsel %vm403, %v388, 0
    %v484 = vsel %vm403, %v299, 0
    %486 = vmatprep.subr.mxu0 0.0
    %487 = vmatpush1.xpose.msra.mxu0 %v484
    %488 = vmatprep.subr.mxu0 0.0
    %489 = vmatpush1.xpose.msra.mxu0 0.0
    %490 = vmatprep.subr.mxu0 0.0
    %491 = vmatpush1.xpose.msra.mxu0 0.0
    %492 = vmatprep.subr.mxu0 0.0
    %493 = vmatpush1.xpose.msra.mxu0 0.0
    %494 = vmatprep.subr.mxu0 0.0
    %495 = vmatpush1.xpose.msra.mxu0 0.0
    %496 = vmatprep.subr.mxu0 0.0
    %497 = vmatpush1.xpose.msra.mxu0 0.0
    %498 = vmatprep.subr.mxu0 0.0
    %499 = vmatpush1.xpose.msra.mxu0 0.0
    %500 = vmatprep.subr.mxu0 0.0
    %501 = vmatpush1.xpose.msra.mxu0 0.0
    %502 = vmatprep.subr.mxu0 0.0
    %503 = vmatpush1.xpose.msra.mxu0 0.0
    %504 = vmatprep.subr.mxu0 0.0
    %505 = vmatpush1.xpose.msra.mxu0 0.0
    %506 = vmatprep.subr.mxu0 0.0
    %507 = vmatpush1.xpose.msra.mxu0 0.0
    %508 = vmatprep.subr.mxu0 0.0
    %509 = vmatpush1.xpose.msra.mxu0 0.0
    %510 = vmatprep.subr.mxu0 0.0
    %511 = vmatpush1.xpose.msra.mxu0 0.0
    %512 = vmatprep.subr.mxu0 0.0
    %513 = vmatpush1.xpose.msra.mxu0 0.0
    %514 = vmatprep.subr.mxu0 0.0
    %515 = vmatpush1.xpose.msra.mxu0 0.0
    %516 = vmatprep.subr.mxu0 0.0
    %517 = vmatpush1.xpose.msra.mxu0 0.0
    %518 = vmatprep.subr.mxu0 0.0
    %519 = vmatpush1.xpose.msra.mxu0 0.0
    %520 = vmatprep.subr.mxu0 0.0
    %521 = vmatpush1.xpose.msra.mxu0 0.0
    %522 = vmatprep.subr.mxu0 0.0
    %523 = vmatpush1.xpose.msra.mxu0 0.0
    %524 = vmatprep.subr.mxu0 0.0
    %525 = vmatpush1.xpose.msra.mxu0 0.0
    %526 = vmatprep.subr.mxu0 0.0
    %527 = vmatpush1.xpose.msra.mxu0 0.0
    %528 = vmatprep.subr.mxu0 0.0
    %529 = vmatpush1.xpose.msra.mxu0 0.0
    %530 = vmatprep.subr.mxu0 0.0
    %531 = vmatpush1.xpose.msra.mxu0 0.0
    %532 = vmatprep.subr.mxu0 0.0
    %533 = vmatpush1.xpose.msra.mxu0 0.0
    %534 = vmatprep.subr.mxu0 0.0
    %535 = vmatpush1.xpose.msra.mxu0 0.0
    %536 = vmatprep.subr.mxu0 0.0
    %537 = vmatpush1.xpose.msra.mxu0 0.0
    %538 = vmatprep.subr.mxu0 0.0
    %539 = vmatpush1.xpose.msra.mxu0 0.0
    %540 = vmatprep.subr.mxu0 0.0
    %541 = vmatpush1.xpose.msra.mxu0 0.0
    %542 = vmatprep.subr.mxu0 0.0
    %543 = vmatpush1.xpose.msra.mxu0 0.0
    %544 = vmatprep.subr.mxu0 0.0
    %545 = vmatpush1.xpose.msra.mxu0 0.0
    %546 = vmatprep.subr.mxu0 0.0
    %547 = vmatpush1.xpose.msra.mxu0 0.0
    %548 = vmatprep.subr.mxu0 0.0
    %549 = vmatpush1.xpose.msra.mxu0 0.0
    %550 = vmatprep.mubr.f32.mxu0 0.0
    %551 = vmatmul.mubr.f32.gmra.mrb[0].mxu0 %v481
    %v552 = vpop.f32.mrb[0].mxu0
    %v553 = vadd.f32 0.0, %v552
    %v554 = vpop.f32.mrb[0].mxu0
    %555 = vdwg.mxu0
    %v556 = vsel %vm403, %v477, -inf
    %557 = vmax.xlane.f32.xlu0 %v556
    %v558 = vpop.xlane.xlu0 %557
    %v559 = vsel %vm403, %v553, -inf
    %560 = vmax.xlane.f32.xlu0 %v559
    %v561 = vpop.xlane.xlu0 %560
    %v562 = vsub.f32 %v477, %v558
    %v563 = vsub.f32 %v553, %v561
    %v564 = vmul.f32 %v562, 1.442695
    %v565 = vpow.pop %v564
    %v566 = vmul.f32 %v563, 1.442695
    %v567 = vpow.pop %v566
    %v568 = vsel %vm403, %v565, 0.0
    %569 = vadd.xlane.f32.xlu0 %v568
    %v570 = vpop.xlane.xlu0 %569
    %v571 = vsel %vm403, %v567, 0.0
    %572 = vadd.xlane.f32.xlu0 %v571
    %v573 = vpop.xlane.xlu0 %572
    %v574 = vrcp.pop %v570
    %v575 = vmul.f32 %v565, %v574
    %v576 = vrcp.pop %v573
    %v577 = vmul.f32 %v567, %v576
    %v578 = vsel %vm403, %v575, 0.0
    %579 = vadd.xlane.f32.xlu0 %v578
    %v580 = vpop.xlane.xlu0 %579
    %v581 = vsel %vm403, %v577, 0.0
    %582 = vadd.xlane.f32.xlu0 %v581
    %v583 = vpop.xlane.xlu0 %582
    %v584 = vmul.f32 %v580, %v395
    %v585 = vmul.f32 %v583, %v402
    %586 = vrot.lane.b32.xlu0 %v387, 120
    %v587 = vpop.permute.xlu0 %586
    %588 = vrot.lane.b32.xlu0 %v294, 120
    %v589 = vpop.permute.xlu0 %588
    %v590 = vsel %vm403, %v587, 0
    %v592 = vsel %vm403, %v589, 0
    %594 = vmatprep.subr.mxu0 0.0
    %595 = vmatpush1.xpose.msra.mxu0 %v592
    %596 = vmatprep.subr.mxu0 0.0
    %597 = vmatpush1.xpose.msra.mxu0 0.0
    %598 = vmatprep.subr.mxu0 0.0
    %599 = vmatpush1.xpose.msra.mxu0 0.0
    %600 = vmatprep.subr.mxu0 0.0
    %601 = vmatpush1.xpose.msra.mxu0 0.0
    %602 = vmatprep.subr.mxu0 0.0
    %603 = vmatpush1.xpose.msra.mxu0 0.0
    %604 = vmatprep.subr.mxu0 0.0
    %605 = vmatpush1.xpose.msra.mxu0 0.0
    %606 = vmatprep.subr.mxu0 0.0
    %607 = vmatpush1.xpose.msra.mxu0 0.0
    %608 = vmatprep.subr.mxu0 0.0
    %609 = vmatpush1.xpose.msra.mxu0 0.0
    %610 = vmatprep.subr.mxu0 0.0
    %611 = vmatpush1.xpose.msra.mxu0 0.0
    %612 = vmatprep.subr.mxu0 0.0
    %613 = vmatpush1.xpose.msra.mxu0 0.0
    %614 = vmatprep.subr.mxu0 0.0
    %615 = vmatpush1.xpose.msra.mxu0 0.0
    %616 = vmatprep.subr.mxu0 0.0
    %617 = vmatpush1.xpose.msra.mxu0 0.0
    %618 = vmatprep.subr.mxu0 0.0
    %619 = vmatpush1.xpose.msra.mxu0 0.0
    %620 = vmatprep.subr.mxu0 0.0
    %621 = vmatpush1.xpose.msra.mxu0 0.0
    %622 = vmatprep.subr.mxu0 0.0
    %623 = vmatpush1.xpose.msra.mxu0 0.0
    %624 = vmatprep.subr.mxu0 0.0
    %625 = vmatpush1.xpose.msra.mxu0 0.0
    %626 = vmatprep.subr.mxu0 0.0
    %627 = vmatpush1.xpose.msra.mxu0 0.0
    %628 = vmatprep.subr.mxu0 0.0
    %629 = vmatpush1.xpose.msra.mxu0 0.0
    %630 = vmatprep.subr.mxu0 0.0
    %631 = vmatpush1.xpose.msra.mxu0 0.0
    %632 = vmatprep.subr.mxu0 0.0
    %633 = vmatpush1.xpose.msra.mxu0 0.0
    %634 = vmatprep.subr.mxu0 0.0
    %635 = vmatpush1.xpose.msra.mxu0 0.0
    %636 = vmatprep.subr.mxu0 0.0
    %637 = vmatpush1.xpose.msra.mxu0 0.0
    %638 = vmatprep.subr.mxu0 0.0
    %639 = vmatpush1.xpose.msra.mxu0 0.0
    %640 = vmatprep.subr.mxu0 0.0
    %641 = vmatpush1.xpose.msra.mxu0 0.0
    %642 = vmatprep.subr.mxu0 0.0
    %643 = vmatpush1.xpose.msra.mxu0 0.0
    %644 = vmatprep.subr.mxu0 0.0
    %645 = vmatpush1.xpose.msra.mxu0 0.0
    %646 = vmatprep.subr.mxu0 0.0
    %647 = vmatpush1.xpose.msra.mxu0 0.0
    %648 = vmatprep.subr.mxu0 0.0
    %649 = vmatpush1.xpose.msra.mxu0 0.0
    %650 = vmatprep.subr.mxu0 0.0
    %651 = vmatpush1.xpose.msra.mxu0 0.0
    %652 = vmatprep.subr.mxu0 0.0
    %653 = vmatpush1.xpose.msra.mxu0 0.0
    %654 = vmatprep.subr.mxu0 0.0
    %655 = vmatpush1.xpose.msra.mxu0 0.0
    %656 = vmatprep.subr.mxu0 0.0
    %657 = vmatpush1.xpose.msra.mxu0 0.0
    %658 = vmatprep.mubr.f32.mxu0 0.0
    %659 = vmatmul.mubr.f32.gmra.mrb[0].mxu0 %v590
    %v660 = vpop.f32.mrb[0].mxu0
    %v661 = vadd.f32 0.0, %v660
    %v662 = vpop.f32.mrb[0].mxu0
    %663 = vdwg.mxu0
    %664 = vrot.lane.b32.xlu0 %v388, 120
    %v665 = vpop.permute.xlu0 %664
    %666 = vrot.lane.b32.xlu0 %v299, 120
    %v667 = vpop.permute.xlu0 %666
    %v668 = vsel %vm403, %v665, 0
    %v670 = vsel %vm403, %v667, 0
    %672 = vmatprep.subr.mxu0 0.0
    %673 = vmatpush1.xpose.msra.mxu0 %v670
    %674 = vmatprep.subr.mxu0 0.0
    %675 = vmatpush1.xpose.msra.mxu0 0.0
    %676 = vmatprep.subr.mxu0 0.0
    %677 = vmatpush1.xpose.msra.mxu0 0.0
    %678 = vmatprep.subr.mxu0 0.0
    %679 = vmatpush1.xpose.msra.mxu0 0.0
    %680 = vmatprep.subr.mxu0 0.0
    %681 = vmatpush1.xpose.msra.mxu0 0.0
    %682 = vmatprep.subr.mxu0 0.0
    %683 = vmatpush1.xpose.msra.mxu0 0.0
    %684 = vmatprep.subr.mxu0 0.0
    %685 = vmatpush1.xpose.msra.mxu0 0.0
    %686 = vmatprep.subr.mxu0 0.0
    %687 = vmatpush1.xpose.msra.mxu0 0.0
    %688 = vmatprep.subr.mxu0 0.0
    %689 = vmatpush1.xpose.msra.mxu0 0.0
    %690 = vmatprep.subr.mxu0 0.0
    %691 = vmatpush1.xpose.msra.mxu0 0.0
    %692 = vmatprep.subr.mxu0 0.0
    %693 = vmatpush1.xpose.msra.mxu0 0.0
    %694 = vmatprep.subr.mxu0 0.0
    %695 = vmatpush1.xpose.msra.mxu0 0.0
    %696 = vmatprep.subr.mxu0 0.0
    %697 = vmatpush1.xpose.msra.mxu0 0.0
    %698 = vmatprep.subr.mxu0 0.0
    %699 = vmatpush1.xpose.msra.mxu0 0.0
    %700 = vmatprep.subr.mxu0 0.0
    %701 = vmatpush1.xpose.msra.mxu0 0.0
    %702 = vmatprep.subr.mxu0 0.0
    %703 = vmatpush1.xpose.msra.mxu0 0.0
    %704 = vmatprep.subr.mxu0 0.0
    %705 = vmatpush1.xpose.msra.mxu0 0.0
    %706 = vmatprep.subr.mxu0 0.0
    %707 = vmatpush1.xpose.msra.mxu0 0.0
    %708 = vmatprep.subr.mxu0 0.0
    %709 = vmatpush1.xpose.msra.mxu0 0.0
    %710 = vmatprep.subr.mxu0 0.0
    %711 = vmatpush1.xpose.msra.mxu0 0.0
    %712 = vmatprep.subr.mxu0 0.0
    %713 = vmatpush1.xpose.msra.mxu0 0.0
    %714 = vmatprep.subr.mxu0 0.0
    %715 = vmatpush1.xpose.msra.mxu0 0.0
    %716 = vmatprep.subr.mxu0 0.0
    %717 = vmatpush1.xpose.msra.mxu0 0.0
    %718 = vmatprep.subr.mxu0 0.0
    %719 = vmatpush1.xpose.msra.mxu0 0.0
    %720 = vmatprep.subr.mxu0 0.0
    %721 = vmatpush1.xpose.msra.mxu0 0.0
    %722 = vmatprep.subr.mxu0 0.0
    %723 = vmatpush1.xpose.msra.mxu0 0.0
    %724 = vmatprep.subr.mxu0 0.0
    %725 = vmatpush1.xpose.msra.mxu0 0.0
    %726 = vmatprep.subr.mxu0 0.0
    %727 = vmatpush1.xpose.msra.mxu0 0.0
    %728 = vmatprep.subr.mxu0 0.0
    %729 = vmatpush1.xpose.msra.mxu0 0.0
    %730 = vmatprep.subr.mxu0 0.0
    %731 = vmatpush1.xpose.msra.mxu0 0.0
    %732 = vmatprep.subr.mxu0 0.0
    %733 = vmatpush1.xpose.msra.mxu0 0.0
    %734 = vmatprep.subr.mxu0 0.0
    %735 = vmatpush1.xpose.msra.mxu0 0.0
    %736 = vmatprep.mubr.f32.mxu0 0.0
    %737 = vmatmul.mubr.f32.gmra.mrb[0].mxu0 %v668
    %v738 = vpop.f32.mrb[0].mxu0
    %v739 = vadd.f32 0.0, %v738
    %v740 = vpop.f32.mrb[0].mxu0
    %741 = vdwg.mxu0
    %v742 = vsel %vm403, %v661, -inf
    %743 = vmax.xlane.f32.xlu0 %v742
    %v744 = vpop.xlane.xlu0 %743
    %v745 = vsel %vm403, %v739, -inf
    %746 = vmax.xlane.f32.xlu0 %v745
    %v747 = vpop.xlane.xlu0 %746
    %v748 = vsub.f32 %v661, %v744
    %v749 = vsub.f32 %v739, %v747
    %v750 = vmul.f32 %v748, 1.442695
    %v751 = vpow.pop %v750
    %v752 = vmul.f32 %v749, 1.442695
    %v753 = vpow.pop %v752
    %v754 = vsel %vm403, %v751, 0.0
    %755 = vadd.xlane.f32.xlu0 %v754
    %v756 = vpop.xlane.xlu0 %755
    %v757 = vsel %vm403, %v753, 0.0
    %758 = vadd.xlane.f32.xlu0 %v757
    %v759 = vpop.xlane.xlu0 %758
    %v760 = vrcp.pop %v756
    %v761 = vmul.f32 %v751, %v760
    %v762 = vrcp.pop %v759
    %v763 = vmul.f32 %v753, %v762
    %v764 = vsel %vm403, %v761, 0.0
    %765 = vadd.xlane.f32.xlu0 %v764
    %v766 = vpop.xlane.xlu0 %765
    %v767 = vsel %vm403, %v763, 0.0
    %768 = vadd.xlane.f32.xlu0 %v767
    %v769 = vpop.xlane.xlu0 %768
    %v770 = vmul.f32 %v766, %v395
    %v771 = vmul.f32 %v769, %v402
    %772 = vrot.lane.b32.xlu0 %v387, 112
    %v773 = vpop.permute.xlu0 %772
    %774 = vrot.lane.b32.xlu0 %v294, 112
    %v775 = vpop.permute.xlu0 %774
    %v776 = vsel %vm403, %v773, 0
    %v778 = vsel %vm403, %v775, 0
    %780 = vmatprep.subr.mxu0 0.0
    %781 = vmatpush1.xpose.msra.mxu0 %v778
    %782 = vmatprep.subr.mxu0 0.0
    %783 = vmatpush1.xpose.msra.mxu0 0.0
    %784 = vmatprep.subr.mxu0 0.0
    %785 = vmatpush1.xpose.msra.mxu0 0.0
    %786 = vmatprep.subr.mxu0 0.0
    %787 = vmatpush1.xpose.msra.mxu0 0.0
    %788 = vmatprep.subr.mxu0 0.0
    %789 = vmatpush1.xpose.msra.mxu0 0.0
    %790 = vmatprep.subr.mxu0 0.0
    %791 = vmatpush1.xpose.msra.mxu0 0.0
    %792 = vmatprep.subr.mxu0 0.0
    %793 = vmatpush1.xpose.msra.mxu0 0.0
    %794 = vmatprep.subr.mxu0 0.0
    %795 = vmatpush1.xpose.msra.mxu0 0.0
    %796 = vmatprep.subr.mxu0 0.0
    %797 = vmatpush1.xpose.msra.mxu0 0.0
    %798 = vmatprep.subr.mxu0 0.0
    %799 = vmatpush1.xpose.msra.mxu0 0.0
    %800 = vmatprep.subr.mxu0 0.0
    %801 = vmatpush1.xpose.msra.mxu0 0.0
    %802 = vmatprep.subr.mxu0 0.0
    %803 = vmatpush1.xpose.msra.mxu0 0.0
    %804 = vmatprep.subr.mxu0 0.0
    %805 = vmatpush1.xpose.msra.mxu0 0.0
    %806 = vmatprep.subr.mxu0 0.0
    %807 = vmatpush1.xpose.msra.mxu0 0.0
    %808 = vmatprep.subr.mxu0 0.0
    %809 = vmatpush1.xpose.msra.mxu0 0.0
    %810 = vmatprep.subr.mxu0 0.0
    %811 = vmatpush1.xpose.msra.mxu0 0.0
    %812 = vmatprep.subr.mxu0 0.0
    %813 = vmatpush1.xpose.msra.mxu0 0.0
    %814 = vmatprep.subr.mxu0 0.0
    %815 = vmatpush1.xpose.msra.mxu0 0.0
    %816 = vmatprep.subr.mxu0 0.0
    %817 = vmatpush1.xpose.msra.mxu0 0.0
    %818 = vmatprep.subr.mxu0 0.0
    %819 = vmatpush1.xpose.msra.mxu0 0.0
    %820 = vmatprep.subr.mxu0 0.0
    %821 = vmatpush1.xpose.msra.mxu0 0.0
    %822 = vmatprep.subr.mxu0 0.0
    %823 = vmatpush1.xpose.msra.mxu0 0.0
    %824 = vmatprep.subr.mxu0 0.0
    %825 = vmatpush1.xpose.msra.mxu0 0.0
    %826 = vmatprep.subr.mxu0 0.0
    %827 = vmatpush1.xpose.msra.mxu0 0.0
    %828 = vmatprep.subr.mxu0 0.0
    %829 = vmatpush1.xpose.msra.mxu0 0.0
    %830 = vmatprep.subr.mxu0 0.0
    %831 = vmatpush1.xpose.msra.mxu0 0.0
    %832 = vmatprep.subr.mxu0 0.0
    %833 = vmatpush1.xpose.msra.mxu0 0.0
    %834 = vmatprep.subr.mxu0 0.0
    %835 = vmatpush1.xpose.msra.mxu0 0.0
    %836 = vmatprep.subr.mxu0 0.0
    %837 = vmatpush1.xpose.msra.mxu0 0.0
    %838 = vmatprep.subr.mxu0 0.0
    %839 = vmatpush1.xpose.msra.mxu0 0.0
    %840 = vmatprep.subr.mxu0 0.0
    %841 = vmatpush1.xpose.msra.mxu0 0.0
    %842 = vmatprep.subr.mxu0 0.0
    %843 = vmatpush1.xpose.msra.mxu0 0.0
    %844 = vmatprep.mubr.f32.mxu0 0.0
    %845 = vmatmul.mubr.f32.gmra.mrb[0].mxu0 %v776
    %v846 = vpop.f32.mrb[0].mxu0
    %v847 = vadd.f32 0.0, %v846
    %v848 = vpop.f32.mrb[0].mxu0
    %849 = vdwg.mxu0
    %850 = vrot.lane.b32.xlu0 %v388, 112
    %v851 = vpop.permute.xlu0 %850
    %852 = vrot.lane.b32.xlu0 %v299, 112
    %v853 = vpop.permute.xlu0 %852
    %v854 = vsel %vm403, %v851, 0
    %v856 = vsel %vm403, %v853, 0
    %858 = vmatprep.subr.mxu0 0.0
    %859 = vmatpush1.xpose.msra.mxu0 %v856
    %860 = vmatprep.subr.mxu0 0.0
    %861 = vmatpush1.xpose.msra.mxu0 0.0
    %862 = vmatprep.subr.mxu0 0.0
    %863 = vmatpush1.xpose.msra.mxu0 0.0
    %864 = vmatprep.subr.mxu0 0.0
    %865 = vmatpush1.xpose.msra.mxu0 0.0
    %866 = vmatprep.subr.mxu0 0.0
    %867 = vmatpush1.xpose.msra.mxu0 0.0
    %868 = vmatprep.subr.mxu0 0.0
    %869 = vmatpush1.xpose.msra.mxu0 0.0
    %870 = vmatprep.subr.mxu0 0.0
    %871 = vmatpush1.xpose.msra.mxu0 0.0
    %872 = vmatprep.subr.mxu0 0.0
    %873 = vmatpush1.xpose.msra.mxu0 0.0
    %874 = vmatprep.subr.mxu0 0.0
    %875 = vmatpush1.xpose.msra.mxu0 0.0
    %876 = vmatprep.subr.mxu0 0.0
    %877 = vmatpush1.xpose.msra.mxu0 0.0
    %878 = vmatprep.subr.mxu0 0.0
    %879 = vmatpush1.xpose.msra.mxu0 0.0
    %880 = vmatprep.subr.mxu0 0.0
    %881 = vmatpush1.xpose.msra.mxu0 0.0
    %882 = vmatprep.subr.mxu0 0.0
    %883 = vmatpush1.xpose.msra.mxu0 0.0
    %884 = vmatprep.subr.mxu0 0.0
    %885 = vmatpush1.xpose.msra.mxu0 0.0
    %886 = vmatprep.subr.mxu0 0.0
    %887 = vmatpush1.xpose.msra.mxu0 0.0
    %888 = vmatprep.subr.mxu0 0.0
    %889 = vmatpush1.xpose.msra.mxu0 0.0
    %890 = vmatprep.subr.mxu0 0.0
    %891 = vmatpush1.xpose.msra.mxu0 0.0
    %892 = vmatprep.subr.mxu0 0.0
    %893 = vmatpush1.xpose.msra.mxu0 0.0
    %894 = vmatprep.subr.mxu0 0.0
    %895 = vmatpush1.xpose.msra.mxu0 0.0
    %896 = vmatprep.subr.mxu0 0.0
    %897 = vmatpush1.xpose.msra.mxu0 0.0
    %898 = vmatprep.subr.mxu0 0.0
    %899 = vmatpush1.xpose.msra.mxu0 0.0
    %900 = vmatprep.subr.mxu0 0.0
    %901 = vmatpush1.xpose.msra.mxu0 0.0
    %902 = vmatprep.subr.mxu0 0.0
    %903 = vmatpush1.xpose.msra.mxu0 0.0
    %904 = vmatprep.subr.mxu0 0.0
    %905 = vmatpush1.xpose.msra.mxu0 0.0
    %906 = vmatprep.subr.mxu0 0.0
    %907 = vmatpush1.xpose.msra.mxu0 0.0
    %908 = vmatprep.subr.mxu0 0.0
    %909 = vmatpush1.xpose.msra.mxu0 0.0
    %910 = vmatprep.subr.mxu0 0.0
    %911 = vmatpush1.xpose.msra.mxu0 0.0
    %912 = vmatprep.subr.mxu0 0.0
    %913 = vmatpush1.xpose.msra.mxu0 0.0
    %914 = vmatprep.subr.mxu0 0.0
    %915 = vmatpush1.xpose.msra.mxu0 0.0
    %916 = vmatprep.subr.mxu0 0.0
    %917 = vmatpush1.xpose.msra.mxu0 0.0
    %918 = vmatprep.subr.mxu0 0.0
    %919 = vmatpush1.xpose.msra.mxu0 0.0
    %920 = vmatprep.subr.mxu0 0.0
    %921 = vmatpush1.xpose.msra.mxu0 0.0
    %922 = vmatprep.mubr.f32.mxu0 0.0
    %923 = vmatmul.mubr.f32.gmra.mrb[0].mxu0 %v854
    %v924 = vpop.f32.mrb[0].mxu0
    %v925 = vadd.f32 0.0, %v924
    %v926 = vpop.f32.mrb[0].mxu0
    %927 = vdwg.mxu0
    %v928 = vsel %vm403, %v847, -inf
    %929 = vmax.xlane.f32.xlu0 %v928
    %v930 = vpop.xlane.xlu0 %929
    %v931 = vsel %vm403, %v925, -inf
    %932 = vmax.xlane.f32.xlu0 %v931
    %v933 = vpop.xlane.xlu0 %932
    %v934 = vsub.f32 %v847, %v930
    %v935 = vsub.f32 %v925, %v933
    %v936 = vmul.f32 %v934, 1.442695
    %v937 = vpow.pop %v936
    %v938 = vmul.f32 %v935, 1.442695
    %v939 = vpow.pop %v938
    %v940 = vsel %vm403, %v937, 0.0
    %941 = vadd.xlane.f32.xlu0 %v940
    %v942 = vpop.xlane.xlu0 %941
    %v943 = vsel %vm403, %v939, 0.0
    %944 = vadd.xlane.f32.xlu0 %v943
    %v945 = vpop.xlane.xlu0 %944
    %v946 = vrcp.pop %v942
    %v947 = vmul.f32 %v937, %v946
    %v948 = vrcp.pop %v945
    %v949 = vmul.f32 %v939, %v948
    %v950 = vsel %vm403, %v947, 0.0
    %951 = vadd.xlane.f32.xlu0 %v950
    %v952 = vpop.xlane.xlu0 %951
    %v953 = vsel %vm403, %v949, 0.0
    %954 = vadd.xlane.f32.xlu0 %v953
    %v955 = vpop.xlane.xlu0 %954
    %v956 = vmul.f32 %v952, %v395
    %v957 = vmul.f32 %v955, %v402
    %958 = vrot.lane.b32.xlu0 %v387, 104
    %v959 = vpop.permute.xlu0 %958
    %960 = vrot.lane.b32.xlu0 %v294, 104
    %v961 = vpop.permute.xlu0 %960
    %v962 = vsel %vm403, %v959, 0
    %v964 = vsel %vm403, %v961, 0
    %966 = vmatprep.subr.mxu0 0.0
    %967 = vmatpush1.xpose.msra.mxu0 %v964
    %968 = vmatprep.subr.mxu0 0.0
    %969 = vmatpush1.xpose.msra.mxu0 0.0
    %970 = vmatprep.subr.mxu0 0.0
    %971 = vmatpush1.xpose.msra.mxu0 0.0
    %972 = vmatprep.subr.mxu0 0.0
    %973 = vmatpush1.xpose.msra.mxu0 0.0
    %974 = vmatprep.subr.mxu0 0.0
    %975 = vmatpush1.xpose.msra.mxu0 0.0
    %976 = vmatprep.subr.mxu0 0.0
    %977 = vmatpush1.xpose.msra.mxu0 0.0
    %978 = vmatprep.subr.mxu0 0.0
    %979 = vmatpush1.xpose.msra.mxu0 0.0
    %980 = vmatprep.subr.mxu0 0.0
    %981 = vmatpush1.xpose.msra.mxu0 0.0
    %982 = vmatprep.subr.mxu0 0.0
    %983 = vmatpush1.xpose.msra.mxu0 0.0
    %984 = vmatprep.subr.mxu0 0.0
    %985 = vmatpush1.xpose.msra.mxu0 0.0
    %986 = vmatprep.subr.mxu0 0.0
    %987 = vmatpush1.xpose.msra.mxu0 0.0
    %988 = vmatprep.subr.mxu0 0.0
    %989 = vmatpush1.xpose.msra.mxu0 0.0
    %990 = vmatprep.subr.mxu0 0.0
    %991 = vmatpush1.xpose.msra.mxu0 0.0
    %992 = vmatprep.subr.mxu0 0.0
    %993 = vmatpush1.xpose.msra.mxu0 0.0
    %994 = vmatprep.subr.mxu0 0.0
    %995 = vmatpush1.xpose.msra.mxu0 0.0
    %996 = vmatprep.subr.mxu0 0.0
    %997 = vmatpush1.xpose.msra.mxu0 0.0
    %998 = vmatprep.subr.mxu0 0.0
    %999 = vmatpush1.xpose.msra.mxu0 0.0
    %1000 = vmatprep.subr.mxu0 0.0
    %1001 = vmatpush1.xpose.msra.mxu0 0.0
    %1002 = vmatprep.subr.mxu0 0.0
    %1003 = vmatpush1.xpose.msra.mxu0 0.0
    %1004 = vmatprep.subr.mxu0 0.0
    %1005 = vmatpush1.xpose.msra.mxu0 0.0
    %1006 = vmatprep.subr.mxu0 0.0
    %1007 = vmatpush1.xpose.msra.mxu0 0.0
    %1008 = vmatprep.subr.mxu0 0.0
    %1009 = vmatpush1.xpose.msra.mxu0 0.0
    %1010 = vmatprep.subr.mxu0 0.0
    %1011 = vmatpush1.xpose.msra.mxu0 0.0
    %1012 = vmatprep.subr.mxu0 0.0
    %1013 = vmatpush1.xpose.msra.mxu0 0.0
    %1014 = vmatprep.subr.mxu0 0.0
    %1015 = vmatpush1.xpose.msra.mxu0 0.0
    %1016 = vmatprep.subr.mxu0 0.0
    %1017 = vmatpush1.xpose.msra.mxu0 0.0
    %1018 = vmatprep.subr.mxu0 0.0
    %1019 = vmatpush1.xpose.msra.mxu0 0.0
    %1020 = vmatprep.subr.mxu0 0.0
    %1021 = vmatpush1.xpose.msra.mxu0 0.0
    %1022 = vmatprep.subr.mxu0 0.0
    %1023 = vmatpush1.xpose.msra.mxu0 0.0
    %1024 = vmatprep.subr.mxu0 0.0
    %1025 = vmatpush1.xpose.msra.mxu0 0.0
    %1026 = vmatprep.subr.mxu0 0.0
    %1027 = vmatpush1.xpose.msra.mxu0 0.0
    %1028 = vmatprep.subr.mxu0 0.0
    %1029 = vmatpush1.xpose.msra.mxu0 0.0
    %1030 = vmatprep.mubr.f32.mxu0 0.0
    %1031 = vmatmul.mubr.f32.gmra.mrb[0].mxu0 %v962
    %v1032 = vpop.f32.mrb[0].mxu0
    %v1033 = vadd.f32 0.0, %v1032
    %v1034 = vpop.f32.mrb[0].mxu0
    %1035 = vdwg.mxu0
    %1036 = vrot.lane.b32.xlu0 %v388, 104
    %v1037 = vpop.permute.xlu0 %1036
    %1038 = vrot.lane.b32.xlu0 %v299, 104
    %v1039 = vpop.permute.xlu0 %1038
    %v1040 = vsel %vm403, %v1037, 0
    %v1042 = vsel %vm403, %v1039, 0
    %1044 = vmatprep.subr.mxu0 0.0
    %1045 = vmatpush1.xpose.msra.mxu0 %v1042
    %1046 = vmatprep.subr.mxu0 0.0
    %1047 = vmatpush1.xpose.msra.mxu0 0.0
    %1048 = vmatprep.subr.mxu0 0.0
    %1049 = vmatpush1.xpose.msra.mxu0 0.0
    %1050 = vmatprep.subr.mxu0 0.0
    %1051 = vmatpush1.xpose.msra.mxu0 0.0
    %1052 = vmatprep.subr.mxu0 0.0
    %1053 = vmatpush1.xpose.msra.mxu0 0.0
    %1054 = vmatprep.subr.mxu0 0.0
    %1055 = vmatpush1.xpose.msra.mxu0 0.0
    %1056 = vmatprep.subr.mxu0 0.0
    %1057 = vmatpush1.xpose.msra.mxu0 0.0
    %1058 = vmatprep.subr.mxu0 0.0
    %1059 = vmatpush1.xpose.msra.mxu0 0.0
    %1060 = vmatprep.subr.mxu0 0.0
    %1061 = vmatpush1.xpose.msra.mxu0 0.0
    %1062 = vmatprep.subr.mxu0 0.0
    %1063 = vmatpush1.xpose.msra.mxu0 0.0
    %1064 = vmatprep.subr.mxu0 0.0
    %1065 = vmatpush1.xpose.msra.mxu0 0.0
    %1066 = vmatprep.subr.mxu0 0.0
    %1067 = vmatpush1.xpose.msra.mxu0 0.0
    %1068 = vmatprep.subr.mxu0 0.0
    %1069 = vmatpush1.xpose.msra.mxu0 0.0
    %1070 = vmatprep.subr.mxu0 0.0
    %1071 = vmatpush1.xpose.msra.mxu0 0.0
    %1072 = vmatprep.subr.mxu0 0.0
    %1073 = vmatpush1.xpose.msra.mxu0 0.0
    %1074 = vmatprep.subr.mxu0 0.0
    %1075 = vmatpush1.xpose.msra.mxu0 0.0
    %1076 = vmatprep.subr.mxu0 0.0
    %1077 = vmatpush1.xpose.msra.mxu0 0.0
    %1078 = vmatprep.subr.mxu0 0.0
    %1079 = vmatpush1.xpose.msra.mxu0 0.0
    %1080 = vmatprep.subr.mxu0 0.0
    %1081 = vmatpush1.xpose.msra.mxu0 0.0
    %1082 = vmatprep.subr.mxu0 0.0
    %1083 = vmatpush1.xpose.msra.mxu0 0.0
    %1084 = vmatprep.subr.mxu0 0.0
    %1085 = vmatpush1.xpose.msra.mxu0 0.0
    %1086 = vmatprep.subr.mxu0 0.0
    %1087 = vmatpush1.xpose.msra.mxu0 0.0
    %1088 = vmatprep.subr.mxu0 0.0
    %1089 = vmatpush1.xpose.msra.mxu0 0.0
    %1090 = vmatprep.subr.mxu0 0.0
    %1091 = vmatpush1.xpose.msra.mxu0 0.0
    %1092 = vmatprep.subr.mxu0 0.0
    %1093 = vmatpush1.xpose.msra.mxu0 0.0
    %1094 = vmatprep.subr.mxu0 0.0
    %1095 = vmatpush1.xpose.msra.mxu0 0.0
    %1096 = vmatprep.subr.mxu0 0.0
    %1097 = vmatpush1.xpose.msra.mxu0 0.0
    %1098 = vmatprep.subr.mxu0 0.0
    %1099 = vmatpush1.xpose.msra.mxu0 0.0
    %1100 = vmatprep.subr.mxu0 0.0
    %1101 = vmatpush1.xpose.msra.mxu0 0.0
    %1102 = vmatprep.subr.mxu0 0.0
    %1103 = vmatpush1.xpose.msra.mxu0 0.0
    %1104 = vmatprep.subr.mxu0 0.0
    %1105 = vmatpush1.xpose.msra.mxu0 0.0
    %1106 = vmatprep.subr.mxu0 0.0
    %1107 = vmatpush1.xpose.msra.mxu0 0.0
    %1108 = vmatprep.mubr.f32.mxu0 0.0
    %1109 = vmatmul.mubr.f32.gmra.mrb[0].mxu0 %v1040
    %v1110 = vpop.f32.mrb[0].mxu0
    %v1111 = vadd.f32 0.0, %v1110
    %v1112 = vpop.f32.mrb[0].mxu0
    %1113 = vdwg.mxu0
    %v1114 = vsel %vm403, %v1033, -inf
    %1115 = vmax.xlane.f32.xlu0 %v1114
    %v1116 = vpop.xlane.xlu0 %1115
    %v1117 = vsel %vm403, %v1111, -inf
    %1118 = vmax.xlane.f32.xlu0 %v1117
    %v1119 = vpop.xlane.xlu0 %1118
    %v1120 = vsub.f32 %v1033, %v1116
    %v1121 = vsub.f32 %v1111, %v1119
    %v1122 = vmul.f32 %v1120, 1.442695
    %v1123 = vpow.pop %v1122
    %v1124 = vmul.f32 %v1121, 1.442695
    %v1125 = vpow.pop %v1124
    %v1126 = vsel %vm403, %v1123, 0.0
    %1127 = vadd.xlane.f32.xlu0 %v1126
    %v1128 = vpop.xlane.xlu0 %1127
    %v1129 = vsel %vm403, %v1125, 0.0
    %1130 = vadd.xlane.f32.xlu0 %v1129
    %v1131 = vpop.xlane.xlu0 %1130
    %v1132 = vrcp.pop %v1128
    %v1133 = vmul.f32 %v1123, %v1132
    %v1134 = vrcp.pop %v1131
    %v1135 = vmul.f32 %v1125, %v1134
    %v1136 = vsel %vm403, %v1133, 0.0
    %1137 = vadd.xlane.f32.xlu0 %v1136
    %v1138 = vpop.xlane.xlu0 %1137
    %v1139 = vsel %vm403, %v1135, 0.0
    %1140 = vadd.xlane.f32.xlu0 %v1139
    %v1141 = vpop.xlane.xlu0 %1140
    %v1142 = vmul.f32 %v1138, %v395
    %v1143 = vmul.f32 %v1141, %v402
    %v1144 = vsel %vm403, %v584, %v770
    %v1145 = vsel %vm403, %v585, %v771
    %vm1146 = vcmask 130048
    %v1147 = vsel %vm1146, %v1144, %v956
    %v1148 = vsel %vm1146, %v1145, %v957
    %vm1149 = vcmask 195584
    %v1150 = vsel %vm1149, %v1147, %v1142
    %v1151 = vsel %vm1149, %v1148, %v1143
    %v1152 = vld [vmem:[#allocation13] sm:$0xff]
    %v1153 = vld [vmem:[#allocation13 + $0x8] sm:$0xff]
    %v1154 = vld [vmem:[#allocation13 + $0x10] sm:$0xff]
    %v1155 = vld [vmem:[#allocation13 + $0x18] sm:$0xff]
    %v1156 = vld [vmem:[%s7] sm:$0x1]
    %v1158 = vlaneseq
    %v1159 = vshrl.u32 %v1158, 7
    %v1160 = vsub.s32 0, %v1159
    %v1161 = vrot.slane %v1156, %v1160
    %v1164 = vsel %vm135, %v1150, 0
    %v1167 = vsel %vm135, %v1151, 0
    %1169 = vmatprep.subr.mxu0 0.0
    %1170 = vmatpush1.msra.mxu0 %v1152
    %1171 = vmatprep.subr.mxu0 0.0
    %1172 = vmatpush1.msra.mxu0 %v1153
    %1173 = vmatprep.subr.mxu0 0.0
    %1174 = vmatpush1.msra.mxu0 %v1154
    %1175 = vmatprep.subr.mxu0 0.0
    %1176 = vmatpush1.msra.mxu0 %v1155
    %1177 = vmatprep.subr.mxu0 0.0
    %1178 = vmatpush1.msra.mxu0 0.0
    %1179 = vmatprep.subr.mxu0 0.0
    %1180 = vmatpush1.msra.mxu0 0.0
    %1181 = vmatprep.subr.mxu0 0.0
    %1182 = vmatpush1.msra.mxu0 0.0
    %1183 = vmatprep.subr.mxu0 0.0
    %1184 = vmatpush1.msra.mxu0 0.0
    %1185 = vmatprep.subr.mxu0 0.0
    %1186 = vmatpush1.msra.mxu0 0.0
    %1187 = vmatprep.subr.mxu0 0.0
    %1188 = vmatpush1.msra.mxu0 0.0
    %1189 = vmatprep.subr.mxu0 0.0
    %1190 = vmatpush1.msra.mxu0 0.0
    %1191 = vmatprep.subr.mxu0 0.0
    %1192 = vmatpush1.msra.mxu0 0.0
    %1193 = vmatprep.subr.mxu0 0.0
    %1194 = vmatpush1.msra.mxu0 0.0
    %1195 = vmatprep.subr.mxu0 0.0
    %1196 = vmatpush1.msra.mxu0 0.0
    %1197 = vmatprep.subr.mxu0 0.0
    %1198 = vmatpush1.msra.mxu0 0.0
    %1199 = vmatprep.subr.mxu0 0.0
    %1200 = vmatpush1.msra.mxu0 0.0
    %1201 = vmatprep.subr.mxu0 0.0
    %1202 = vmatpush1.msra.mxu0 0.0
    %1203 = vmatprep.subr.mxu0 0.0
    %1204 = vmatpush1.msra.mxu0 0.0
    %1205 = vmatprep.subr.mxu0 0.0
    %1206 = vmatpush1.msra.mxu0 0.0
    %1207 = vmatprep.subr.mxu0 0.0
    %1208 = vmatpush1.msra.mxu0 0.0
    %1209 = vmatprep.subr.mxu0 0.0
    %1210 = vmatpush1.msra.mxu0 0.0
    %1211 = vmatprep.subr.mxu0 0.0
    %1212 = vmatpush1.msra.mxu0 0.0
    %1213 = vmatprep.subr.mxu0 0.0
    %1214 = vmatpush1.msra.mxu0 0.0
    %1215 = vmatprep.subr.mxu0 0.0
    %1216 = vmatpush1.msra.mxu0 0.0
    %1217 = vmatprep.subr.mxu0 0.0
    %1218 = vmatpush1.msra.mxu0 0.0
    %1219 = vmatprep.subr.mxu0 0.0
    %1220 = vmatpush1.msra.mxu0 0.0
    %1221 = vmatprep.subr.mxu0 0.0
    %1222 = vmatpush1.msra.mxu0 0.0
    %1223 = vmatprep.subr.mxu0 0.0
    %1224 = vmatpush1.msra.mxu0 0.0
    %1225 = vmatprep.subr.mxu0 0.0
    %1226 = vmatpush1.msra.mxu0 0.0
    %1227 = vmatprep.subr.mxu0 0.0
    %1228 = vmatpush1.msra.mxu0 0.0
    %1229 = vmatprep.subr.mxu0 0.0
    %1230 = vmatpush1.msra.mxu0 0.0
    %1231 = vmatprep.subr.mxu0 0.0
    %1232 = vmatpush1.msra.mxu0 0.0
    %1233 = vmatprep.mubr.f32.mxu0 0.0
    %1234 = vmatmul.mubr.f32.gmra.mrb[0].mxu0 %v1164
    %v1235 = vpop.f32.mrb[0].mxu0
    %v1236 = vadd.f32 %v1161, %v1235
    %v1237 = vpop.f32.mrb[0].mxu0
    %1238 = vmatprep.mubr.f32.mxu0 0.0
    %1239 = vmatmul.mubr.f32.gmra.mrb[0].mxu0 %v1167
    %v1240 = vpop.f32.mrb[0].mxu0
    %v1241 = vadd.f32 %v1161, %v1240
    %v1242 = vpop.f32.mrb[0].mxu0
    %1243 = vdwg.mxu0
    %1244 = vst.msk [vmem:[#allocation14] sm:$0xff] %vm135, %v1236
    %1245 = vst.msk [vmem:[#allocation14 + $0x8] sm:$0xff] %vm135, %v1241
    // Predicated region
    $region62: #{tpu_custom_call.1} parent=1 // pred_check
      _
    $region63: #{tpu_custom_call.1} parent=1 // pred_check_branch
      %1247 = sbr.rel (0) target = $region65
    $region64: #{tpu_custom_call.1} parent=1 // pred_region
      %s1249 = ssub.s32 256, 256
      %1250 = vsyncadd [#allocation4], %s1249
      %s1251 = sshll.u32 [#allocation14], 4
      %s1252 = int_to_ptr.vmem [resolvable:$true] %s1251
      %1257 = dma.vmem_to_hbm [thread:$0]  %s1252, 256, %s8, [#allocation4], 128, 128, 8
    $region65: #{tpu_custom_call.1} parent=1 // pred_fallthru
      _
    // Predicated region
    $region66: #{tpu_custom_call.1} parent=1 // pred_check
      _
    $region67: #{tpu_custom_call.1} parent=1 // pred_check_branch
      %1259 = sbr.rel (0) target = $region69
    $region68: #{tpu_custom_call.1} parent=1 // pred_region
      %1260 = dma.done [#allocation4], 256
    $region69: #{tpu_custom_call.1} parent=1 // pred_fallthru
      _
    %1261 = vsyncpa [#allocation3], 1
    %1262 = vsyncpa [#allocation6], 1
    %1263 = vsyncpa [#allocation9], 1
    %1264 = vsyncpa [#allocation12], 1
    %1265 = vsyncpa [#allocation4], 1

</llo_original>
